<compile_context>
chip_gen: v5e
topology: v5e:2x2
jax: 0.10.0
libtpu: 0.0.40
codegen_flags: <defaults>
</compile_context>

<pallas_src>
import functools

import jax
import jax.numpy as jnp
from jax.experimental import pallas as pl
from jax.experimental.pallas import tpu as pltpu
import numpy as np


def _lstm_kernel(x_ref, w_ih_ref, w_hh_ref, b_ref, fcw_ref, fcb_ref,
                 out_ref, h_ref, c_ref, pg_ref, *, t_total, t_blk):
    """One grid step processes a block of `t_blk` timesteps.

    x_ref   : (TBLK, BP, D)     time-major input block (streamed, double-buffered)
    w_ih_ref: (D, 4*HP)         input weights, each gate padded to HP (128-aligned)
    w_hh_ref: (HP, 4*HP)        recurrent weights, gate-padded
    b_ref   : (1, 4*HP)         b_ih + b_hh, gate-padded
    fcw_ref : (1, HP)           fc weight, padded
    fcb_ref : (1, 1)            fc bias
    out_ref : (BP, 1)           fc(h_T), written at the last grid step
    h_ref/c_ref: (BP, HP)       recurrent state, persistent VMEM scratch
    pg_ref  : (TBLK*BP, 4*HP)   hoisted input-projection for this block
    """
    tb = pl.program_id(0)
    nb = pl.num_programs(0)
    TBLK, BP, D = x_ref.shape
    HP = h_ref.shape[1]

    @pl.when(tb == 0)
    def _init():
        h_ref[...] = jnp.zeros_like(h_ref)
        c_ref[...] = jnp.zeros_like(c_ref)

    # ---- Phase 1: hoisted input projection for the whole time-block -----------
    # One MXU-friendly matmul, off the serial h-chain. Rows are time-major
    # (row = j*BP + b) so the per-step slice below is a sublane-aligned block.
    x2 = x_ref[...].reshape(TBLK * BP, D)
    pg_ref[...] = (
        jnp.dot(x2, w_ih_ref[...], preferred_element_type=jnp.float32)
        + b_ref[...]
    )

    # ---- Phase 2: serial recurrence over the block (fully unrolled) -----------
    def step(j):
        h = h_ref[...]
        c = c_ref[...]
        gx = pg_ref[j * BP:(j + 1) * BP, :]                       # (BP, 4*HP)
        gates = gx + jnp.dot(h, w_hh_ref[...],
                             preferred_element_type=jnp.float32)
        # PyTorch gate order i, f, g, o; each slice is a full 128-lane tile.
        i_g = jax.nn.sigmoid(gates[:, 0 * HP:1 * HP])
        f_g = jax.nn.sigmoid(gates[:, 1 * HP:2 * HP])
        g_g = jnp.tanh(gates[:, 2 * HP:3 * HP])
        o_g = jax.nn.sigmoid(gates[:, 3 * HP:4 * HP])
        c_new = f_g * c + i_g * g_g
        c_ref[...] = c_new
        h_ref[...] = o_g * jnp.tanh(c_new)

    has_tail = (t_total % t_blk) != 0
    for j in range(TBLK):                      # static unroll
        if has_tail:
            pl.when(tb * t_blk + j < t_total)(functools.partial(step, j))
        else:
            step(j)

    # ---- Phase 3: final Linear(hidden -> 1) on the last hidden state ----------
    @pl.when(tb == nb - 1)
    def _finalize():
        h_last = h_ref[...]
        # VPU multiply + lane reduction instead of an N=1 MXU matmul.
        out_ref[...] = (jnp.sum(h_last * fcw_ref[...], axis=-1, keepdims=True)
                        + fcb_ref[...])


def lstm_forward(x, params, *, time_block=16, interpret=False):
    """x: (B, T, D) float32, batch_first like the PyTorch module. Returns (B, 1)."""
    w_ih, w_hh, b_ih, b_hh, fc_w, fc_b = params
    B, T, D = x.shape
    H = w_hh.shape[1]                         # w_hh: (4H, H)
    f32 = jnp.float32

    HP = ((H + 127) // 128) * 128             # each gate padded to 128-lane multiple
    BP = ((B + 7) // 8) * 8                   # batch padded to 8 sublanes
    TBLK = min(time_block, T)
    n_blocks = pl.cdiv(T, TBLK)
    TP = n_blocks * TBLK

    # x -> time-major (TP, BP, D), zero-padded (padded steps are skipped in-kernel,
    # padded batch rows are dropped at the end).
    xp = jnp.zeros((TP, BP, D), f32)
    xp = xp.at[:T, :B, :].set(jnp.transpose(x.astype(f32), (1, 0, 2)))

    # Gate-padded weight layout: columns [i | f | g | o], each HP lanes wide.
    w_ih4 = jnp.zeros((4, HP, D), f32).at[:, :H, :].set(
        w_ih.astype(f32).reshape(4, H, D))
    w_ih_p = jnp.transpose(w_ih4, (2, 0, 1)).reshape(D, 4 * HP)        # (D, 4*HP)

    w_hh4 = jnp.zeros((4, HP, HP), f32).at[:, :H, :H].set(
        w_hh.astype(f32).reshape(4, H, H))
    w_hh_p = jnp.transpose(w_hh4, (2, 0, 1)).reshape(HP, 4 * HP)       # (HP, 4*HP)

    b4 = jnp.zeros((4, HP), f32).at[:, :H].set(
        (b_ih + b_hh).astype(f32).reshape(4, H))
    b_p = b4.reshape(1, 4 * HP)

    fcw_p = jnp.zeros((1, HP), f32).at[:, :H].set(fc_w.astype(f32))
    fcb_p = fc_b.reshape(1, 1).astype(f32)

    kernel = functools.partial(_lstm_kernel, t_total=T, t_blk=TBLK)

    out_p = pl.pallas_call(
        kernel,
        out_shape=jax.ShapeDtypeStruct((BP, 1), f32),
        grid_spec=pltpu.PrefetchScalarGridSpec(
            num_scalar_prefetch=0,
            grid=(n_blocks,),
            in_specs=[
                pl.BlockSpec((TBLK, BP, D), lambda t: (t, 0, 0)),   # streamed x
                pl.BlockSpec((D, 4 * HP), lambda t: (0, 0)),        # resident weights
                pl.BlockSpec((HP, 4 * HP), lambda t: (0, 0)),
                pl.BlockSpec((1, 4 * HP), lambda t: (0, 0)),
                pl.BlockSpec((1, HP), lambda t: (0, 0)),
                pl.BlockSpec((1, 1), lambda t: (0, 0)),
            ],
            out_specs=pl.BlockSpec((BP, 1), lambda t: (0, 0)),
            scratch_shapes=[
                pltpu.VMEM((BP, HP), f32),                 # h
                pltpu.VMEM((BP, HP), f32),                 # c
                pltpu.VMEM((TBLK * BP, 4 * HP), f32),      # per-block pre-gates
            ],
        ),
        compiler_params=pltpu.CompilerParams(
            dimension_semantics=("arbitrary",),            # recurrence is serial in T
        ),
        interpret=interpret,
    )(xp, w_ih_p, w_hh_p, b_p, fcw_p, fcb_p)

    return out_p[:B]


def lstm_reference(x, params):
    """Pure-JAX reference matching torch.nn.LSTM + Linear semantics."""
    w_ih, w_hh, b_ih, b_hh, fc_w, fc_b = params
    B, T, D = x.shape
    H = w_hh.shape[1]
    h = jnp.zeros((B, H), jnp.float32)
    c = jnp.zeros((B, H), jnp.float32)
    for t in range(T):
        gates = x[:, t, :] @ w_ih.T + b_ih + h @ w_hh.T + b_hh
        i_g = jax.nn.sigmoid(gates[:, 0 * H:1 * H])
        f_g = jax.nn.sigmoid(gates[:, 1 * H:2 * H])
        g_g = jnp.tanh(gates[:, 2 * H:3 * H])
        o_g = jax.nn.sigmoid(gates[:, 3 * H:4 * H])
        c = f_g * c + i_g * g_g
        h = o_g * jnp.tanh(c)
    return h @ fc_w.T + fc_b


def init_params(key, input_size, hidden_size):
    """Deterministic init, same shapes as nn.LSTM(l0) + nn.Linear(hidden, 1)."""
    k = jax.random.split(key, 6)
    s = 1.0 / np.sqrt(hidden_size)
    u = lambda kk, shape: jax.random.uniform(kk, shape, jnp.float32, -s, s)
    w_ih = u(k[0], (4 * hidden_size, input_size))
    w_hh = u(k[1], (4 * hidden_size, hidden_size))
    b_ih = u(k[2], (4 * hidden_size,))
    b_hh = u(k[3], (4 * hidden_size,))
    fc_w = u(k[4], (1, hidden_size))
    fc_b = u(k[5], (1,))
    return (w_ih, w_hh, b_ih, b_hh, fc_w, fc_b)


if __name__ == "__main__":
    B, T, D, H = 2, 8, 16, 32
    key = jax.random.PRNGKey(0)
    kx, kp = jax.random.split(key)
    x = jax.random.normal(kx, (B, T, D), jnp.float32)
    params = init_params(kp, D, H)

    out = lstm_forward(x, params)
    out = jax.block_until_ready(out)

    ref = lstm_reference(x, params)
    assert out.shape == (B, 1)
    np.testing.assert_allclose(np.asarray(out), np.asarray(ref), rtol=1e-5, atol=1e-5)

    print("KERNEL_OK")
</pallas_src>

<mosaic_0001>
module attributes {stable_mosaic.version = 11 : i64} {
  func.func @_lstm_kernel(%arg0: i32, %arg1: memref<8x8x16xf32, #tpu.memory_space<vmem>>, %arg2: memref<16x512xf32, #tpu.memory_space<vmem>>, %arg3: memref<128x512xf32, #tpu.memory_space<vmem>>, %arg4: memref<1x512xf32, #tpu.memory_space<vmem>>, %arg5: memref<1x128xf32, #tpu.memory_space<vmem>>, %arg6: memref<1x1xf32, #tpu.memory_space<vmem>>, %arg7: memref<8x1xf32, #tpu.memory_space<vmem>>, %arg8: memref<8x128xf32, #tpu.memory_space<vmem>>, %arg9: memref<8x128xf32, #tpu.memory_space<vmem>>, %arg10: memref<64x512xf32, #tpu.memory_space<vmem>>) attributes {dimension_semantics = [#tpu.dimension_semantics<arbitrary>], iteration_bounds = array<i64: 1>, scalar_prefetch = 0 : i64, scratch_operands = 3 : i64, tpu.core_type = #tpu.core_type<tc>, window_params = [{transform_indices = @transform_0, window_bounds = array<i64: 8, 8, 16>}, {pipeline_mode = #tpu.pipeline_mode<synchronous>, transform_indices = @transform_1, window_bounds = array<i64: 16, 512>}, {pipeline_mode = #tpu.pipeline_mode<synchronous>, transform_indices = @transform_2, window_bounds = array<i64: 128, 512>}, {pipeline_mode = #tpu.pipeline_mode<synchronous>, transform_indices = @transform_3, window_bounds = array<i64: 1, 512>}, {pipeline_mode = #tpu.pipeline_mode<synchronous>, transform_indices = @transform_4, window_bounds = array<i64: 1, 128>}, {pipeline_mode = #tpu.pipeline_mode<synchronous>, transform_indices = @transform_5, window_bounds = array<i64: 1, 1>}, {pipeline_mode = #tpu.pipeline_mode<synchronous>, transform_indices = @transform_6, window_bounds = array<i64: 8, 1>}]} {
    %c0_i32 = arith.constant 0 : i32
    %0 = arith.cmpi eq, %arg0, %c0_i32 : i32
    %1 = arith.extui %0 : i1 to i32
    %c0_i32_0 = arith.constant 0 : i32
    %2 = arith.cmpi ne, %1, %c0_i32_0 : i32
    scf.if %2 {
      %cst_132 = arith.constant 0.000000e+00 : f32
      %278 = vector.broadcast %cst_132 : f32 to vector<8x128xf32>
      %c0_133 = arith.constant 0 : index
      %c0_134 = arith.constant 0 : index
      %279 = vector.load %arg8[%c0_133, %c0_134] : memref<8x128xf32, #tpu.memory_space<vmem>>, vector<8x128xf32>
      tpu.vector_store %arg8[%c0_133, %c0_134], %278 {strides = array<i32>} : memref<8x128xf32, #tpu.memory_space<vmem>>, vector<8x128xf32>,
      %cst_135 = arith.constant 0.000000e+00 : f32
      %280 = vector.broadcast %cst_135 : f32 to vector<8x128xf32>
      %c0_136 = arith.constant 0 : index
      %c0_137 = arith.constant 0 : index
      %281 = vector.load %arg9[%c0_136, %c0_137] : memref<8x128xf32, #tpu.memory_space<vmem>>, vector<8x128xf32>
      tpu.vector_store %arg9[%c0_136, %c0_137], %280 {strides = array<i32>} : memref<8x128xf32, #tpu.memory_space<vmem>>, vector<8x128xf32>,
    } else {
    }
    %c0 = arith.constant 0 : index
    %c0_1 = arith.constant 0 : index
    %c0_2 = arith.constant 0 : index
    %3 = vector.load %arg1[%c0, %c0_1, %c0_2] : memref<8x8x16xf32, #tpu.memory_space<vmem>>, vector<8x8x16xf32>
    %4 = vector.shape_cast %3 : vector<8x8x16xf32> to vector<64x16xf32>
    %c0_3 = arith.constant 0 : index
    %c0_4 = arith.constant 0 : index
    %5 = vector.load %arg2[%c0_3, %c0_4] : memref<16x512xf32, #tpu.memory_space<vmem>>, vector<16x512xf32>
    %cst = arith.constant dense<0.000000e+00> : vector<64x512xf32>
    %6 = tpu.matmul %4, %5, %cst {dimension_numbers = #tpu.dot_dimension_numbers<[1], [0], [0], [1], [0, 0, 1, 1], [], []>} : vector<64x16xf32>, vector<16x512xf32>, vector<64x512xf32> -> vector<64x512xf32>
    %c0_5 = arith.constant 0 : index
    %c0_6 = arith.constant 0 : index
    %7 = vector.load %arg4[%c0_5, %c0_6] : memref<1x512xf32, #tpu.memory_space<vmem>>, vector<1x512xf32>
    %8 = vector.broadcast %7 : vector<1x512xf32> to vector<64x512xf32>
    %9 = arith.addf %6, %8 : vector<64x512xf32>
    %c0_7 = arith.constant 0 : index
    %c0_8 = arith.constant 0 : index
    %10 = vector.load %arg10[%c0_7, %c0_8] : memref<64x512xf32, #tpu.memory_space<vmem>>, vector<64x512xf32>
    tpu.vector_store %arg10[%c0_7, %c0_8], %9 {strides = array<i32>} : memref<64x512xf32, #tpu.memory_space<vmem>>, vector<64x512xf32>,
    %c0_9 = arith.constant 0 : index
    %c0_10 = arith.constant 0 : index
    %11 = vector.load %arg8[%c0_9, %c0_10] : memref<8x128xf32, #tpu.memory_space<vmem>>, vector<8x128xf32>
    %c0_11 = arith.constant 0 : index
    %c0_12 = arith.constant 0 : index
    %12 = vector.load %arg9[%c0_11, %c0_12] : memref<8x128xf32, #tpu.memory_space<vmem>>, vector<8x128xf32>
    %c0_13 = arith.constant 0 : index
    %c0_14 = arith.constant 0 : index
    %13 = vector.load %arg10[%c0_13, %c0_14] : memref<64x512xf32, #tpu.memory_space<vmem>>, vector<8x512xf32>
    %c0_15 = arith.constant 0 : index
    %c0_16 = arith.constant 0 : index
    %14 = vector.load %arg3[%c0_15, %c0_16] : memref<128x512xf32, #tpu.memory_space<vmem>>, vector<128x512xf32>
    %cst_17 = arith.constant dense<0.000000e+00> : vector<8x512xf32>
    %15 = tpu.matmul %11, %14, %cst_17 {dimension_numbers = #tpu.dot_dimension_numbers<[1], [0], [0], [1], [0, 0, 1, 1], [], []>} : vector<8x128xf32>, vector<128x512xf32>, vector<8x512xf32> -> vector<8x512xf32>
    %16 = arith.addf %13, %15 : vector<8x512xf32>
    %17 = vector.extract_strided_slice %16 {offsets = [0, 0], sizes = [8, 128], strides = [1, 1]} : vector<8x512xf32> to vector<8x128xf32>
    %18 = arith.negf %17 : vector<8x128xf32>
    %19 = math.exp %18 : vector<8x128xf32>
    %cst_18 = arith.constant 1.000000e+00 : f32
    %20 = vector.broadcast %cst_18 : f32 to vector<8x128xf32>
    %21 = arith.addf %20, %19 : vector<8x128xf32>
    %22 = arith.divf %20, %21 : vector<8x128xf32>
    %23 = vector.extract_strided_slice %16 {offsets = [0, 128], sizes = [8, 128], strides = [1, 1]} : vector<8x512xf32> to vector<8x128xf32>
    %24 = arith.negf %23 : vector<8x128xf32>
    %25 = math.exp %24 : vector<8x128xf32>
    %cst_19 = arith.constant 1.000000e+00 : f32
    %26 = vector.broadcast %cst_19 : f32 to vector<8x128xf32>
    %27 = arith.addf %26, %25 : vector<8x128xf32>
    %28 = arith.divf %26, %27 : vector<8x128xf32>
    %29 = vector.extract_strided_slice %16 {offsets = [0, 256], sizes = [8, 128], strides = [1, 1]} : vector<8x512xf32> to vector<8x128xf32>
    %30 = math.tanh %29 : vector<8x128xf32>
    %31 = vector.extract_strided_slice %16 {offsets = [0, 384], sizes = [8, 128], strides = [1, 1]} : vector<8x512xf32> to vector<8x128xf32>
    %32 = arith.negf %31 : vector<8x128xf32>
    %33 = math.exp %32 : vector<8x128xf32>
    %cst_20 = arith.constant 1.000000e+00 : f32
    %34 = vector.broadcast %cst_20 : f32 to vector<8x128xf32>
    %35 = arith.addf %34, %33 : vector<8x128xf32>
    %36 = arith.divf %34, %35 : vector<8x128xf32>
    %37 = arith.mulf %28, %12 : vector<8x128xf32>
    %38 = arith.mulf %22, %30 : vector<8x128xf32>
    %39 = arith.addf %37, %38 : vector<8x128xf32>
    %c0_21 = arith.constant 0 : index
    %c0_22 = arith.constant 0 : index
    %40 = vector.load %arg9[%c0_21, %c0_22] : memref<8x128xf32, #tpu.memory_space<vmem>>, vector<8x128xf32>
    tpu.vector_store %arg9[%c0_21, %c0_22], %39 {strides = array<i32>} : memref<8x128xf32, #tpu.memory_space<vmem>>, vector<8x128xf32>,
    %41 = math.tanh %39 : vector<8x128xf32>
    %42 = arith.mulf %36, %41 : vector<8x128xf32>
    %c0_23 = arith.constant 0 : index
    %c0_24 = arith.constant 0 : index
    %43 = vector.load %arg8[%c0_23, %c0_24] : memref<8x128xf32, #tpu.memory_space<vmem>>, vector<8x128xf32>
    tpu.vector_store %arg8[%c0_23, %c0_24], %42 {strides = array<i32>} : memref<8x128xf32, #tpu.memory_space<vmem>>, vector<8x128xf32>,
    %c0_25 = arith.constant 0 : index
    %c0_26 = arith.constant 0 : index
    %44 = vector.load %arg8[%c0_25, %c0_26] : memref<8x128xf32, #tpu.memory_space<vmem>>, vector<8x128xf32>
    %c0_27 = arith.constant 0 : index
    %c0_28 = arith.constant 0 : index
    %45 = vector.load %arg9[%c0_27, %c0_28] : memref<8x128xf32, #tpu.memory_space<vmem>>, vector<8x128xf32>
    %c8 = arith.constant 8 : index
    %c0_29 = arith.constant 0 : index
    %46 = vector.load %arg10[%c8, %c0_29] : memref<64x512xf32, #tpu.memory_space<vmem>>, vector<8x512xf32>
    %c0_30 = arith.constant 0 : index
    %c0_31 = arith.constant 0 : index
    %47 = vector.load %arg3[%c0_30, %c0_31] : memref<128x512xf32, #tpu.memory_space<vmem>>, vector<128x512xf32>
    %cst_32 = arith.constant dense<0.000000e+00> : vector<8x512xf32>
    %48 = tpu.matmul %44, %47, %cst_32 {dimension_numbers = #tpu.dot_dimension_numbers<[1], [0], [0], [1], [0, 0, 1, 1], [], []>} : vector<8x128xf32>, vector<128x512xf32>, vector<8x512xf32> -> vector<8x512xf32>
    %49 = arith.addf %46, %48 : vector<8x512xf32>
    %50 = vector.extract_strided_slice %49 {offsets = [0, 0], sizes = [8, 128], strides = [1, 1]} : vector<8x512xf32> to vector<8x128xf32>
    %51 = arith.negf %50 : vector<8x128xf32>
    %52 = math.exp %51 : vector<8x128xf32>
    %cst_33 = arith.constant 1.000000e+00 : f32
    %53 = vector.broadcast %cst_33 : f32 to vector<8x128xf32>
    %54 = arith.addf %53, %52 : vector<8x128xf32>
    %55 = arith.divf %53, %54 : vector<8x128xf32>
    %56 = vector.extract_strided_slice %49 {offsets = [0, 128], sizes = [8, 128], strides = [1, 1]} : vector<8x512xf32> to vector<8x128xf32>
    %57 = arith.negf %56 : vector<8x128xf32>
    %58 = math.exp %57 : vector<8x128xf32>
    %cst_34 = arith.constant 1.000000e+00 : f32
    %59 = vector.broadcast %cst_34 : f32 to vector<8x128xf32>
    %60 = arith.addf %59, %58 : vector<8x128xf32>
    %61 = arith.divf %59, %60 : vector<8x128xf32>
    %62 = vector.extract_strided_slice %49 {offsets = [0, 256], sizes = [8, 128], strides = [1, 1]} : vector<8x512xf32> to vector<8x128xf32>
    %63 = math.tanh %62 : vector<8x128xf32>
    %64 = vector.extract_strided_slice %49 {offsets = [0, 384], sizes = [8, 128], strides = [1, 1]} : vector<8x512xf32> to vector<8x128xf32>
    %65 = arith.negf %64 : vector<8x128xf32>
    %66 = math.exp %65 : vector<8x128xf32>
    %cst_35 = arith.constant 1.000000e+00 : f32
    %67 = vector.broadcast %cst_35 : f32 to vector<8x128xf32>
    %68 = arith.addf %67, %66 : vector<8x128xf32>
    %69 = arith.divf %67, %68 : vector<8x128xf32>
    %70 = arith.mulf %61, %45 : vector<8x128xf32>
    %71 = arith.mulf %55, %63 : vector<8x128xf32>
    %72 = arith.addf %70, %71 : vector<8x128xf32>
    %c0_36 = arith.constant 0 : index
    %c0_37 = arith.constant 0 : index
    %73 = vector.load %arg9[%c0_36, %c0_37] : memref<8x128xf32, #tpu.memory_space<vmem>>, vector<8x128xf32>
    tpu.vector_store %arg9[%c0_36, %c0_37], %72 {strides = array<i32>} : memref<8x128xf32, #tpu.memory_space<vmem>>, vector<8x128xf32>,
    %74 = math.tanh %72 : vector<8x128xf32>
    %75 = arith.mulf %69, %74 : vector<8x128xf32>
    %c0_38 = arith.constant 0 : index
    %c0_39 = arith.constant 0 : index
    %76 = vector.load %arg8[%c0_38, %c0_39] : memref<8x128xf32, #tpu.memory_space<vmem>>, vector<8x128xf32>
    tpu.vector_store %arg8[%c0_38, %c0_39], %75 {strides = array<i32>} : memref<8x128xf32, #tpu.memory_space<vmem>>, vector<8x128xf32>,
    %c0_40 = arith.constant 0 : index
    %c0_41 = arith.constant 0 : index
    %77 = vector.load %arg8[%c0_40, %c0_41] : memref<8x128xf32, #tpu.memory_space<vmem>>, vector<8x128xf32>
    %c0_42 = arith.constant 0 : index
    %c0_43 = arith.constant 0 : index
    %78 = vector.load %arg9[%c0_42, %c0_43] : memref<8x128xf32, #tpu.memory_space<vmem>>, vector<8x128xf32>
    %c16 = arith.constant 16 : index
    %c0_44 = arith.constant 0 : index
    %79 = vector.load %arg10[%c16, %c0_44] : memref<64x512xf32, #tpu.memory_space<vmem>>, vector<8x512xf32>
    %c0_45 = arith.constant 0 : index
    %c0_46 = arith.constant 0 : index
    %80 = vector.load %arg3[%c0_45, %c0_46] : memref<128x512xf32, #tpu.memory_space<vmem>>, vector<128x512xf32>
    %cst_47 = arith.constant dense<0.000000e+00> : vector<8x512xf32>
    %81 = tpu.matmul %77, %80, %cst_47 {dimension_numbers = #tpu.dot_dimension_numbers<[1], [0], [0], [1], [0, 0, 1, 1], [], []>} : vector<8x128xf32>, vector<128x512xf32>, vector<8x512xf32> -> vector<8x512xf32>
    %82 = arith.addf %79, %81 : vector<8x512xf32>
    %83 = vector.extract_strided_slice %82 {offsets = [0, 0], sizes = [8, 128], strides = [1, 1]} : vector<8x512xf32> to vector<8x128xf32>
    %84 = arith.negf %83 : vector<8x128xf32>
    %85 = math.exp %84 : vector<8x128xf32>
    %cst_48 = arith.constant 1.000000e+00 : f32
    %86 = vector.broadcast %cst_48 : f32 to vector<8x128xf32>
    %87 = arith.addf %86, %85 : vector<8x128xf32>
    %88 = arith.divf %86, %87 : vector<8x128xf32>
    %89 = vector.extract_strided_slice %82 {offsets = [0, 128], sizes = [8, 128], strides = [1, 1]} : vector<8x512xf32> to vector<8x128xf32>
    %90 = arith.negf %89 : vector<8x128xf32>
    %91 = math.exp %90 : vector<8x128xf32>
    %cst_49 = arith.constant 1.000000e+00 : f32
    %92 = vector.broadcast %cst_49 : f32 to vector<8x128xf32>
    %93 = arith.addf %92, %91 : vector<8x128xf32>
    %94 = arith.divf %92, %93 : vector<8x128xf32>
    %95 = vector.extract_strided_slice %82 {offsets = [0, 256], sizes = [8, 128], strides = [1, 1]} : vector<8x512xf32> to vector<8x128xf32>
    %96 = math.tanh %95 : vector<8x128xf32>
    %97 = vector.extract_strided_slice %82 {offsets = [0, 384], sizes = [8, 128], strides = [1, 1]} : vector<8x512xf32> to vector<8x128xf32>
    %98 = arith.negf %97 : vector<8x128xf32>
    %99 = math.exp %98 : vector<8x128xf32>
    %cst_50 = arith.constant 1.000000e+00 : f32
    %100 = vector.broadcast %cst_50 : f32 to vector<8x128xf32>
    %101 = arith.addf %100, %99 : vector<8x128xf32>
    %102 = arith.divf %100, %101 : vector<8x128xf32>
    %103 = arith.mulf %94, %78 : vector<8x128xf32>
    %104 = arith.mulf %88, %96 : vector<8x128xf32>
    %105 = arith.addf %103, %104 : vector<8x128xf32>
    %c0_51 = arith.constant 0 : index
    %c0_52 = arith.constant 0 : index
    %106 = vector.load %arg9[%c0_51, %c0_52] : memref<8x128xf32, #tpu.memory_space<vmem>>, vector<8x128xf32>
    tpu.vector_store %arg9[%c0_51, %c0_52], %105 {strides = array<i32>} : memref<8x128xf32, #tpu.memory_space<vmem>>, vector<8x128xf32>,
    %107 = math.tanh %105 : vector<8x128xf32>
    %108 = arith.mulf %102, %107 : vector<8x128xf32>
    %c0_53 = arith.constant 0 : index
    %c0_54 = arith.constant 0 : index
    %109 = vector.load %arg8[%c0_53, %c0_54] : memref<8x128xf32, #tpu.memory_space<vmem>>, vector<8x128xf32>
    tpu.vector_store %arg8[%c0_53, %c0_54], %108 {strides = array<i32>} : memref<8x128xf32, #tpu.memory_space<vmem>>, vector<8x128xf32>,
    %c0_55 = arith.constant 0 : index
    %c0_56 = arith.constant 0 : index
    %110 = vector.load %arg8[%c0_55, %c0_56] : memref<8x128xf32, #tpu.memory_space<vmem>>, vector<8x128xf32>
    %c0_57 = arith.constant 0 : index
    %c0_58 = arith.constant 0 : index
    %111 = vector.load %arg9[%c0_57, %c0_58] : memref<8x128xf32, #tpu.memory_space<vmem>>, vector<8x128xf32>
    %c24 = arith.constant 24 : index
    %c0_59 = arith.constant 0 : index
    %112 = vector.load %arg10[%c24, %c0_59] : memref<64x512xf32, #tpu.memory_space<vmem>>, vector<8x512xf32>
    %c0_60 = arith.constant 0 : index
    %c0_61 = arith.constant 0 : index
    %113 = vector.load %arg3[%c0_60, %c0_61] : memref<128x512xf32, #tpu.memory_space<vmem>>, vector<128x512xf32>
    %cst_62 = arith.constant dense<0.000000e+00> : vector<8x512xf32>
    %114 = tpu.matmul %110, %113, %cst_62 {dimension_numbers = #tpu.dot_dimension_numbers<[1], [0], [0], [1], [0, 0, 1, 1], [], []>} : vector<8x128xf32>, vector<128x512xf32>, vector<8x512xf32> -> vector<8x512xf32>
    %115 = arith.addf %112, %114 : vector<8x512xf32>
    %116 = vector.extract_strided_slice %115 {offsets = [0, 0], sizes = [8, 128], strides = [1, 1]} : vector<8x512xf32> to vector<8x128xf32>
    %117 = arith.negf %116 : vector<8x128xf32>
    %118 = math.exp %117 : vector<8x128xf32>
    %cst_63 = arith.constant 1.000000e+00 : f32
    %119 = vector.broadcast %cst_63 : f32 to vector<8x128xf32>
    %120 = arith.addf %119, %118 : vector<8x128xf32>
    %121 = arith.divf %119, %120 : vector<8x128xf32>
    %122 = vector.extract_strided_slice %115 {offsets = [0, 128], sizes = [8, 128], strides = [1, 1]} : vector<8x512xf32> to vector<8x128xf32>
    %123 = arith.negf %122 : vector<8x128xf32>
    %124 = math.exp %123 : vector<8x128xf32>
    %cst_64 = arith.constant 1.000000e+00 : f32
    %125 = vector.broadcast %cst_64 : f32 to vector<8x128xf32>
    %126 = arith.addf %125, %124 : vector<8x128xf32>
    %127 = arith.divf %125, %126 : vector<8x128xf32>
    %128 = vector.extract_strided_slice %115 {offsets = [0, 256], sizes = [8, 128], strides = [1, 1]} : vector<8x512xf32> to vector<8x128xf32>
    %129 = math.tanh %128 : vector<8x128xf32>
    %130 = vector.extract_strided_slice %115 {offsets = [0, 384], sizes = [8, 128], strides = [1, 1]} : vector<8x512xf32> to vector<8x128xf32>
    %131 = arith.negf %130 : vector<8x128xf32>
    %132 = math.exp %131 : vector<8x128xf32>
    %cst_65 = arith.constant 1.000000e+00 : f32
    %133 = vector.broadcast %cst_65 : f32 to vector<8x128xf32>
    %134 = arith.addf %133, %132 : vector<8x128xf32>
    %135 = arith.divf %133, %134 : vector<8x128xf32>
    %136 = arith.mulf %127, %111 : vector<8x128xf32>
    %137 = arith.mulf %121, %129 : vector<8x128xf32>
    %138 = arith.addf %136, %137 : vector<8x128xf32>
    %c0_66 = arith.constant 0 : index
    %c0_67 = arith.constant 0 : index
    %139 = vector.load %arg9[%c0_66, %c0_67] : memref<8x128xf32, #tpu.memory_space<vmem>>, vector<8x128xf32>
    tpu.vector_store %arg9[%c0_66, %c0_67], %138 {strides = array<i32>} : memref<8x128xf32, #tpu.memory_space<vmem>>, vector<8x128xf32>,
    %140 = math.tanh %138 : vector<8x128xf32>
    %141 = arith.mulf %135, %140 : vector<8x128xf32>
    %c0_68 = arith.constant 0 : index
    %c0_69 = arith.constant 0 : index
    %142 = vector.load %arg8[%c0_68, %c0_69] : memref<8x128xf32, #tpu.memory_space<vmem>>, vector<8x128xf32>
    tpu.vector_store %arg8[%c0_68, %c0_69], %141 {strides = array<i32>} : memref<8x128xf32, #tpu.memory_space<vmem>>, vector<8x128xf32>,
    %c0_70 = arith.constant 0 : index
    %c0_71 = arith.constant 0 : index
    %143 = vector.load %arg8[%c0_70, %c0_71] : memref<8x128xf32, #tpu.memory_space<vmem>>, vector<8x128xf32>
    %c0_72 = arith.constant 0 : index
    %c0_73 = arith.constant 0 : index
    %144 = vector.load %arg9[%c0_72, %c0_73] : memref<8x128xf32, #tpu.memory_space<vmem>>, vector<8x128xf32>
    %c32 = arith.constant 32 : index
    %c0_74 = arith.constant 0 : index
    %145 = vector.load %arg10[%c32, %c0_74] : memref<64x512xf32, #tpu.memory_space<vmem>>, vector<8x512xf32>
    %c0_75 = arith.constant 0 : index
    %c0_76 = arith.constant 0 : index
    %146 = vector.load %arg3[%c0_75, %c0_76] : memref<128x512xf32, #tpu.memory_space<vmem>>, vector<128x512xf32>
    %cst_77 = arith.constant dense<0.000000e+00> : vector<8x512xf32>
    %147 = tpu.matmul %143, %146, %cst_77 {dimension_numbers = #tpu.dot_dimension_numbers<[1], [0], [0], [1], [0, 0, 1, 1], [], []>} : vector<8x128xf32>, vector<128x512xf32>, vector<8x512xf32> -> vector<8x512xf32>
    %148 = arith.addf %145, %147 : vector<8x512xf32>
    %149 = vector.extract_strided_slice %148 {offsets = [0, 0], sizes = [8, 128], strides = [1, 1]} : vector<8x512xf32> to vector<8x128xf32>
    %150 = arith.negf %149 : vector<8x128xf32>
    %151 = math.exp %150 : vector<8x128xf32>
    %cst_78 = arith.constant 1.000000e+00 : f32
    %152 = vector.broadcast %cst_78 : f32 to vector<8x128xf32>
    %153 = arith.addf %152, %151 : vector<8x128xf32>
    %154 = arith.divf %152, %153 : vector<8x128xf32>
    %155 = vector.extract_strided_slice %148 {offsets = [0, 128], sizes = [8, 128], strides = [1, 1]} : vector<8x512xf32> to vector<8x128xf32>
    %156 = arith.negf %155 : vector<8x128xf32>
    %157 = math.exp %156 : vector<8x128xf32>
    %cst_79 = arith.constant 1.000000e+00 : f32
    %158 = vector.broadcast %cst_79 : f32 to vector<8x128xf32>
    %159 = arith.addf %158, %157 : vector<8x128xf32>
    %160 = arith.divf %158, %159 : vector<8x128xf32>
    %161 = vector.extract_strided_slice %148 {offsets = [0, 256], sizes = [8, 128], strides = [1, 1]} : vector<8x512xf32> to vector<8x128xf32>
    %162 = math.tanh %161 : vector<8x128xf32>
    %163 = vector.extract_strided_slice %148 {offsets = [0, 384], sizes = [8, 128], strides = [1, 1]} : vector<8x512xf32> to vector<8x128xf32>
    %164 = arith.negf %163 : vector<8x128xf32>
    %165 = math.exp %164 : vector<8x128xf32>
    %cst_80 = arith.constant 1.000000e+00 : f32
    %166 = vector.broadcast %cst_80 : f32 to vector<8x128xf32>
    %167 = arith.addf %166, %165 : vector<8x128xf32>
    %168 = arith.divf %166, %167 : vector<8x128xf32>
    %169 = arith.mulf %160, %144 : vector<8x128xf32>
    %170 = arith.mulf %154, %162 : vector<8x128xf32>
    %171 = arith.addf %169, %170 : vector<8x128xf32>
    %c0_81 = arith.constant 0 : index
    %c0_82 = arith.constant 0 : index
    %172 = vector.load %arg9[%c0_81, %c0_82] : memref<8x128xf32, #tpu.memory_space<vmem>>, vector<8x128xf32>
    tpu.vector_store %arg9[%c0_81, %c0_82], %171 {strides = array<i32>} : memref<8x128xf32, #tpu.memory_space<vmem>>, vector<8x128xf32>,
    %173 = math.tanh %171 : vector<8x128xf32>
    %174 = arith.mulf %168, %173 : vector<8x128xf32>
    %c0_83 = arith.constant 0 : index
    %c0_84 = arith.constant 0 : index
    %175 = vector.load %arg8[%c0_83, %c0_84] : memref<8x128xf32, #tpu.memory_space<vmem>>, vector<8x128xf32>
    tpu.vector_store %arg8[%c0_83, %c0_84], %174 {strides = array<i32>} : memref<8x128xf32, #tpu.memory_space<vmem>>, vector<8x128xf32>,
    %c0_85 = arith.constant 0 : index
    %c0_86 = arith.constant 0 : index
    %176 = vector.load %arg8[%c0_85, %c0_86] : memref<8x128xf32, #tpu.memory_space<vmem>>, vector<8x128xf32>
    %c0_87 = arith.constant 0 : index
    %c0_88 = arith.constant 0 : index
    %177 = vector.load %arg9[%c0_87, %c0_88] : memref<8x128xf32, #tpu.memory_space<vmem>>, vector<8x128xf32>
    %c40 = arith.constant 40 : index
    %c0_89 = arith.constant 0 : index
    %178 = vector.load %arg10[%c40, %c0_89] : memref<64x512xf32, #tpu.memory_space<vmem>>, vector<8x512xf32>
    %c0_90 = arith.constant 0 : index
    %c0_91 = arith.constant 0 : index
    %179 = vector.load %arg3[%c0_90, %c0_91] : memref<128x512xf32, #tpu.memory_space<vmem>>, vector<128x512xf32>
    %cst_92 = arith.constant dense<0.000000e+00> : vector<8x512xf32>
    %180 = tpu.matmul %176, %179, %cst_92 {dimension_numbers = #tpu.dot_dimension_numbers<[1], [0], [0], [1], [0, 0, 1, 1], [], []>} : vector<8x128xf32>, vector<128x512xf32>, vector<8x512xf32> -> vector<8x512xf32>
    %181 = arith.addf %178, %180 : vector<8x512xf32>
    %182 = vector.extract_strided_slice %181 {offsets = [0, 0], sizes = [8, 128], strides = [1, 1]} : vector<8x512xf32> to vector<8x128xf32>
    %183 = arith.negf %182 : vector<8x128xf32>
    %184 = math.exp %183 : vector<8x128xf32>
    %cst_93 = arith.constant 1.000000e+00 : f32
    %185 = vector.broadcast %cst_93 : f32 to vector<8x128xf32>
    %186 = arith.addf %185, %184 : vector<8x128xf32>
    %187 = arith.divf %185, %186 : vector<8x128xf32>
    %188 = vector.extract_strided_slice %181 {offsets = [0, 128], sizes = [8, 128], strides = [1, 1]} : vector<8x512xf32> to vector<8x128xf32>
    %189 = arith.negf %188 : vector<8x128xf32>
    %190 = math.exp %189 : vector<8x128xf32>
    %cst_94 = arith.constant 1.000000e+00 : f32
    %191 = vector.broadcast %cst_94 : f32 to vector<8x128xf32>
    %192 = arith.addf %191, %190 : vector<8x128xf32>
    %193 = arith.divf %191, %192 : vector<8x128xf32>
    %194 = vector.extract_strided_slice %181 {offsets = [0, 256], sizes = [8, 128], strides = [1, 1]} : vector<8x512xf32> to vector<8x128xf32>
    %195 = math.tanh %194 : vector<8x128xf32>
    %196 = vector.extract_strided_slice %181 {offsets = [0, 384], sizes = [8, 128], strides = [1, 1]} : vector<8x512xf32> to vector<8x128xf32>
    %197 = arith.negf %196 : vector<8x128xf32>
    %198 = math.exp %197 : vector<8x128xf32>
    %cst_95 = arith.constant 1.000000e+00 : f32
    %199 = vector.broadcast %cst_95 : f32 to vector<8x128xf32>
    %200 = arith.addf %199, %198 : vector<8x128xf32>
    %201 = arith.divf %199, %200 : vector<8x128xf32>
    %202 = arith.mulf %193, %177 : vector<8x128xf32>
    %203 = arith.mulf %187, %195 : vector<8x128xf32>
    %204 = arith.addf %202, %203 : vector<8x128xf32>
    %c0_96 = arith.constant 0 : index
    %c0_97 = arith.constant 0 : index
    %205 = vector.load %arg9[%c0_96, %c0_97] : memref<8x128xf32, #tpu.memory_space<vmem>>, vector<8x128xf32>
    tpu.vector_store %arg9[%c0_96, %c0_97], %204 {strides = array<i32>} : memref<8x128xf32, #tpu.memory_space<vmem>>, vector<8x128xf32>,
    %206 = math.tanh %204 : vector<8x128xf32>
    %207 = arith.mulf %201, %206 : vector<8x128xf32>
    %c0_98 = arith.constant 0 : index
    %c0_99 = arith.constant 0 : index
    %208 = vector.load %arg8[%c0_98, %c0_99] : memref<8x128xf32, #tpu.memory_space<vmem>>, vector<8x128xf32>
    tpu.vector_store %arg8[%c0_98, %c0_99], %207 {strides = array<i32>} : memref<8x128xf32, #tpu.memory_space<vmem>>, vector<8x128xf32>,
    %c0_100 = arith.constant 0 : index
    %c0_101 = arith.constant 0 : index
    %209 = vector.load %arg8[%c0_100, %c0_101] : memref<8x128xf32, #tpu.memory_space<vmem>>, vector<8x128xf32>
    %c0_102 = arith.constant 0 : index
    %c0_103 = arith.constant 0 : index
    %210 = vector.load %arg9[%c0_102, %c0_103] : memref<8x128xf32, #tpu.memory_space<vmem>>, vector<8x128xf32>
    %c48 = arith.constant 48 : index
    %c0_104 = arith.constant 0 : index
    %211 = vector.load %arg10[%c48, %c0_104] : memref<64x512xf32, #tpu.memory_space<vmem>>, vector<8x512xf32>
    %c0_105 = arith.constant 0 : index
    %c0_106 = arith.constant 0 : index
    %212 = vector.load %arg3[%c0_105, %c0_106] : memref<128x512xf32, #tpu.memory_space<vmem>>, vector<128x512xf32>
    %cst_107 = arith.constant dense<0.000000e+00> : vector<8x512xf32>
    %213 = tpu.matmul %209, %212, %cst_107 {dimension_numbers = #tpu.dot_dimension_numbers<[1], [0], [0], [1], [0, 0, 1, 1], [], []>} : vector<8x128xf32>, vector<128x512xf32>, vector<8x512xf32> -> vector<8x512xf32>
    %214 = arith.addf %211, %213 : vector<8x512xf32>
    %215 = vector.extract_strided_slice %214 {offsets = [0, 0], sizes = [8, 128], strides = [1, 1]} : vector<8x512xf32> to vector<8x128xf32>
    %216 = arith.negf %215 : vector<8x128xf32>
    %217 = math.exp %216 : vector<8x128xf32>
    %cst_108 = arith.constant 1.000000e+00 : f32
    %218 = vector.broadcast %cst_108 : f32 to vector<8x128xf32>
    %219 = arith.addf %218, %217 : vector<8x128xf32>
    %220 = arith.divf %218, %219 : vector<8x128xf32>
    %221 = vector.extract_strided_slice %214 {offsets = [0, 128], sizes = [8, 128], strides = [1, 1]} : vector<8x512xf32> to vector<8x128xf32>
    %222 = arith.negf %221 : vector<8x128xf32>
    %223 = math.exp %222 : vector<8x128xf32>
    %cst_109 = arith.constant 1.000000e+00 : f32
    %224 = vector.broadcast %cst_109 : f32 to vector<8x128xf32>
    %225 = arith.addf %224, %223 : vector<8x128xf32>
    %226 = arith.divf %224, %225 : vector<8x128xf32>
    %227 = vector.extract_strided_slice %214 {offsets = [0, 256], sizes = [8, 128], strides = [1, 1]} : vector<8x512xf32> to vector<8x128xf32>
    %228 = math.tanh %227 : vector<8x128xf32>
    %229 = vector.extract_strided_slice %214 {offsets = [0, 384], sizes = [8, 128], strides = [1, 1]} : vector<8x512xf32> to vector<8x128xf32>
    %230 = arith.negf %229 : vector<8x128xf32>
    %231 = math.exp %230 : vector<8x128xf32>
    %cst_110 = arith.constant 1.000000e+00 : f32
    %232 = vector.broadcast %cst_110 : f32 to vector<8x128xf32>
    %233 = arith.addf %232, %231 : vector<8x128xf32>
    %234 = arith.divf %232, %233 : vector<8x128xf32>
    %235 = arith.mulf %226, %210 : vector<8x128xf32>
    %236 = arith.mulf %220, %228 : vector<8x128xf32>
    %237 = arith.addf %235, %236 : vector<8x128xf32>
    %c0_111 = arith.constant 0 : index
    %c0_112 = arith.constant 0 : index
    %238 = vector.load %arg9[%c0_111, %c0_112] : memref<8x128xf32, #tpu.memory_space<vmem>>, vector<8x128xf32>
    tpu.vector_store %arg9[%c0_111, %c0_112], %237 {strides = array<i32>} : memref<8x128xf32, #tpu.memory_space<vmem>>, vector<8x128xf32>,
    %239 = math.tanh %237 : vector<8x128xf32>
    %240 = arith.mulf %234, %239 : vector<8x128xf32>
    %c0_113 = arith.constant 0 : index
    %c0_114 = arith.constant 0 : index
    %241 = vector.load %arg8[%c0_113, %c0_114] : memref<8x128xf32, #tpu.memory_space<vmem>>, vector<8x128xf32>
    tpu.vector_store %arg8[%c0_113, %c0_114], %240 {strides = array<i32>} : memref<8x128xf32, #tpu.memory_space<vmem>>, vector<8x128xf32>,
    %c0_115 = arith.constant 0 : index
    %c0_116 = arith.constant 0 : index
    %242 = vector.load %arg8[%c0_115, %c0_116] : memref<8x128xf32, #tpu.memory_space<vmem>>, vector<8x128xf32>
    %c0_117 = arith.constant 0 : index
    %c0_118 = arith.constant 0 : index
    %243 = vector.load %arg9[%c0_117, %c0_118] : memref<8x128xf32, #tpu.memory_space<vmem>>, vector<8x128xf32>
    %c56 = arith.constant 56 : index
    %c0_119 = arith.constant 0 : index
    %244 = vector.load %arg10[%c56, %c0_119] : memref<64x512xf32, #tpu.memory_space<vmem>>, vector<8x512xf32>
    %c0_120 = arith.constant 0 : index
    %c0_121 = arith.constant 0 : index
    %245 = vector.load %arg3[%c0_120, %c0_121] : memref<128x512xf32, #tpu.memory_space<vmem>>, vector<128x512xf32>
    %cst_122 = arith.constant dense<0.000000e+00> : vector<8x512xf32>
    %246 = tpu.matmul %242, %245, %cst_122 {dimension_numbers = #tpu.dot_dimension_numbers<[1], [0], [0], [1], [0, 0, 1, 1], [], []>} : vector<8x128xf32>, vector<128x512xf32>, vector<8x512xf32> -> vector<8x512xf32>
    %247 = arith.addf %244, %246 : vector<8x512xf32>
    %248 = vector.extract_strided_slice %247 {offsets = [0, 0], sizes = [8, 128], strides = [1, 1]} : vector<8x512xf32> to vector<8x128xf32>
    %249 = arith.negf %248 : vector<8x128xf32>
    %250 = math.exp %249 : vector<8x128xf32>
    %cst_123 = arith.constant 1.000000e+00 : f32
    %251 = vector.broadcast %cst_123 : f32 to vector<8x128xf32>
    %252 = arith.addf %251, %250 : vector<8x128xf32>
    %253 = arith.divf %251, %252 : vector<8x128xf32>
    %254 = vector.extract_strided_slice %247 {offsets = [0, 128], sizes = [8, 128], strides = [1, 1]} : vector<8x512xf32> to vector<8x128xf32>
    %255 = arith.negf %254 : vector<8x128xf32>
    %256 = math.exp %255 : vector<8x128xf32>
    %cst_124 = arith.constant 1.000000e+00 : f32
    %257 = vector.broadcast %cst_124 : f32 to vector<8x128xf32>
    %258 = arith.addf %257, %256 : vector<8x128xf32>
    %259 = arith.divf %257, %258 : vector<8x128xf32>
    %260 = vector.extract_strided_slice %247 {offsets = [0, 256], sizes = [8, 128], strides = [1, 1]} : vector<8x512xf32> to vector<8x128xf32>
    %261 = math.tanh %260 : vector<8x128xf32>
    %262 = vector.extract_strided_slice %247 {offsets = [0, 384], sizes = [8, 128], strides = [1, 1]} : vector<8x512xf32> to vector<8x128xf32>
    %263 = arith.negf %262 : vector<8x128xf32>
    %264 = math.exp %263 : vector<8x128xf32>
    %cst_125 = arith.constant 1.000000e+00 : f32
    %265 = vector.broadcast %cst_125 : f32 to vector<8x128xf32>
    %266 = arith.addf %265, %264 : vector<8x128xf32>
    %267 = arith.divf %265, %266 : vector<8x128xf32>
    %268 = arith.mulf %259, %243 : vector<8x128xf32>
    %269 = arith.mulf %253, %261 : vector<8x128xf32>
    %270 = arith.addf %268, %269 : vector<8x128xf32>
    %c0_126 = arith.constant 0 : index
    %c0_127 = arith.constant 0 : index
    %271 = vector.load %arg9[%c0_126, %c0_127] : memref<8x128xf32, #tpu.memory_space<vmem>>, vector<8x128xf32>
    tpu.vector_store %arg9[%c0_126, %c0_127], %270 {strides = array<i32>} : memref<8x128xf32, #tpu.memory_space<vmem>>, vector<8x128xf32>,
    %272 = math.tanh %270 : vector<8x128xf32>
    %273 = arith.mulf %267, %272 : vector<8x128xf32>
    %c0_128 = arith.constant 0 : index
    %c0_129 = arith.constant 0 : index
    %274 = vector.load %arg8[%c0_128, %c0_129] : memref<8x128xf32, #tpu.memory_space<vmem>>, vector<8x128xf32>
    tpu.vector_store %arg8[%c0_128, %c0_129], %273 {strides = array<i32>} : memref<8x128xf32, #tpu.memory_space<vmem>>, vector<8x128xf32>,
    %c0_i32_130 = arith.constant 0 : i32
    %275 = arith.cmpi eq, %arg0, %c0_i32_130 : i32
    %276 = arith.extui %275 : i1 to i32
    %c0_i32_131 = arith.constant 0 : i32
    %277 = arith.cmpi ne, %276, %c0_i32_131 : i32
    scf.if %277 {
      %c0_132 = arith.constant 0 : index
      %c0_133 = arith.constant 0 : index
      %278 = vector.load %arg8[%c0_132, %c0_133] : memref<8x128xf32, #tpu.memory_space<vmem>>, vector<8x128xf32>
      %c0_134 = arith.constant 0 : index
      %c0_135 = arith.constant 0 : index
      %279 = vector.load %arg5[%c0_134, %c0_135] : memref<1x128xf32, #tpu.memory_space<vmem>>, vector<1x128xf32>
      %280 = vector.broadcast %279 : vector<1x128xf32> to vector<8x128xf32>
      %281 = arith.mulf %278, %280 : vector<8x128xf32>
      %cst_136 = arith.constant dense<0.000000e+00> : vector<8xf32>
      %282 = vector.multi_reduction <add>, %281, %cst_136 [1] : vector<8x128xf32> to vector<8xf32>
      %283 = vector.shape_cast %282 : vector<8xf32> to vector<8x1xf32>
      %c0_137 = arith.constant 0 : index
      %c0_138 = arith.constant 0 : index
      %284 = vector.load %arg6[%c0_137, %c0_138] : memref<1x1xf32, #tpu.memory_space<vmem>>, vector<1x1xf32>
      %285 = vector.broadcast %284 : vector<1x1xf32> to vector<8x1xf32>
      %286 = arith.addf %283, %285 : vector<8x1xf32>
      %c0_139 = arith.constant 0 : index
      %c0_140 = arith.constant 0 : index
      %287 = vector.load %arg7[%c0_139, %c0_140] : memref<8x1xf32, #tpu.memory_space<vmem>>, vector<8x1xf32>
      tpu.vector_store %arg7[%c0_139, %c0_140], %286 {strides = array<i32>} : memref<8x1xf32, #tpu.memory_space<vmem>>, vector<8x1xf32>,
    } else {
    }
    return
  }
  func.func @transform_0(%arg0: i32) -> (i32, i32, i32) {
    %c0_i32 = arith.constant 0 : i32
    %c0_i32_0 = arith.constant 0 : i32
    %c0_i32_1 = arith.constant 0 : i32
    return %arg0, %c0_i32, %c0_i32_0 : i32, i32, i32
  }
  func.func @transform_1(%arg0: i32) -> (i32, i32) {
    %c0_i32 = arith.constant 0 : i32
    %c0_i32_0 = arith.constant 0 : i32
    %c0_i32_1 = arith.constant 0 : i32
    return %c0_i32, %c0_i32_0 : i32, i32
  }
  func.func @transform_2(%arg0: i32) -> (i32, i32) {
    %c0_i32 = arith.constant 0 : i32
    %c0_i32_0 = arith.constant 0 : i32
    %c0_i32_1 = arith.constant 0 : i32
    return %c0_i32, %c0_i32_0 : i32, i32
  }
  func.func @transform_3(%arg0: i32) -> (i32, i32) {
    %c0_i32 = arith.constant 0 : i32
    %c0_i32_0 = arith.constant 0 : i32
    %c0_i32_1 = arith.constant 0 : i32
    return %c0_i32, %c0_i32_0 : i32, i32
  }
  func.func @transform_4(%arg0: i32) -> (i32, i32) {
    %c0_i32 = arith.constant 0 : i32
    %c0_i32_0 = arith.constant 0 : i32
    %c0_i32_1 = arith.constant 0 : i32
    return %c0_i32, %c0_i32_0 : i32, i32
  }
  func.func @transform_5(%arg0: i32) -> (i32, i32) {
    %c0_i32 = arith.constant 0 : i32
    %c0_i32_0 = arith.constant 0 : i32
    %c0_i32_1 = arith.constant 0 : i32
    return %c0_i32, %c0_i32_0 : i32, i32
  }
  func.func @transform_6(%arg0: i32) -> (i32, i32) {
    %c0_i32 = arith.constant 0 : i32
    %c0_i32_0 = arith.constant 0 : i32
    %c0_i32_1 = arith.constant 0 : i32
    return %c0_i32, %c0_i32_0 : i32, i32
  }
}

</mosaic_0001>

<llo_original>
// kernel: tpu_custom_call.1
$region0: #{tpu_custom_call.1}
  #allocation0 [shape = 'u32[]', space=smem, size = 0x4, offset = 0x4, fixed_abs, tag = 'smem constant byte address 0x4 - core index']
  #allocation1 [shape = 'u32[72,128]{1,0:T(1,128)}', space=vmem, size = 0x9000, scoped, tag = 'internal scratch']
  #allocation2 [shape = 'f32[8,128]{1,0:T(8,128)}', space=vmem, size = 0x1000, scoped, tag = 'scratch operand']
  #allocation3 [shape = 'f32[8,128]{1,0:T(8,128)}', space=vmem, size = 0x1000, scoped, tag = 'scratch operand']
  #allocation4 [shape = 'f32[64,512]{1,0:T(8,128)}', space=vmem, size = 0x20000, scoped, tag = 'scratch operand']
  #allocation5 [shape = 'f32[1,1]{1,0:T(1,128)S(1)}', space=vmem, size = 0x200, scoped, tag = 'scoped memory for tpu_custom_call.1']
  %s0 = inlined_call_operand.hbm [shape: f32[8,8,16], index: 0, kind: input, shape index: {}]
  %s1 = inlined_call_operand.hbm [shape: f32[16,512], index: 1, kind: input, shape index: {}]
  %s2 = inlined_call_operand.hbm [shape: f32[128,512], index: 2, kind: input, shape index: {}]
  %s3 = inlined_call_operand.vmem [shape: f32[1,512], index: 3, kind: input, shape index: {}]
  %s4 = inlined_call_operand.vmem [shape: f32[1,128], index: 4, kind: input, shape index: {}]
  %s5 = inlined_call_operand.<no memory space> [shape: f32[1,1], index: 5, kind: input, shape index: {}]
  %s6 = inlined_call_operand.vmem [shape: f32[8,1], index: 6, kind: output, shape index: {}]
  %s7 = sld [smem:[#allocation0]]
  $region54: #{tpu_custom_call.1} parent=0
    _
  %s9 = ssub.s32 1, %s7
  %s10 = scalar_select 0, %s9, %s7
  %v11 = vstv %s5
  %12 = vst [vmem:[#allocation5] sm:$0x1] %v11
  $region1: #{tpu_custom_call.1} parent=0
    #allocation6 [shape = 'u8[32768]{0}', space=vmem, size = 0x8000, scoped, tag = 'input window, operand 0, single buffered']
    #allocation7 [shape = 's32[1]{0}', space=sflag, size = 0x4, scoped, tag = 'scoped memory for tpu_custom_call.1']
    #allocation8 [shape = 'u8[32768]{0}', space=vmem, size = 0x8000, scoped, tag = 'input window, operand 1, single buffered']
    #allocation9 [shape = 's32[1]{0}', space=sflag, size = 0x4, scoped, tag = 'scoped memory for tpu_custom_call.1']
    #allocation10 [shape = 'u8[262144]{0}', space=vmem, size = 0x40000, scoped, tag = 'input window, operand 2, single buffered']
    %13 = vsyncpa [#allocation7], 0
    %14 = vsyncpa [#allocation9], 0
    // Predicated region
    $region2: #{tpu_custom_call.1} parent=1 // pred_check
      _
    $region3: #{tpu_custom_call.1} parent=1 // pred_check_branch
      %16 = sbr.rel (0) target = $region5
    $region4: #{tpu_custom_call.1} parent=1 // pred_region
      %18 = vsyncadd [#allocation7], 0
      %s19 = sshll.u32 %s0, 4
      %s20 = int_to_ptr.hbm [resolvable:$true] %s19
      %s21 = sshll.u32 [#allocation6], 4
      %s22 = int_to_ptr.vmem [resolvable:$true] %s21
      %27 = dma.hbm_to_vmem [thread:$0]  %s20, 1024, %s22, [#allocation7], 128, 128, 8
    $region5: #{tpu_custom_call.1} parent=1 // pred_fallthru
      _
    // Predicated region
    $region6: #{tpu_custom_call.1} parent=1 // pred_check
      _
    $region7: #{tpu_custom_call.1} parent=1 // pred_check_branch
      %29 = sbr.rel (0) target = $region9
    $region8: #{tpu_custom_call.1} parent=1 // pred_region
      %31 = vsyncadd [#allocation9], 0
      %s32 = sshll.u32 %s1, 4
      %s33 = int_to_ptr.hbm [resolvable:$true] %s32
      %s34 = sshll.u32 [#allocation8], 4
      %s35 = int_to_ptr.vmem [resolvable:$true] %s34
      %40 = dma.hbm_to_vmem [thread:$0]  %s33, 1024, %s35, [#allocation9], 512, 512, 32
    $region9: #{tpu_custom_call.1} parent=1 // pred_fallthru
      _
    // Predicated region
    $region10: #{tpu_custom_call.1} parent=1 // pred_check
      _
    $region11: #{tpu_custom_call.1} parent=1 // pred_check_branch
      %42 = sbr.rel (0) target = $region13
    $region12: #{tpu_custom_call.1} parent=1 // pred_region
      %44 = vsyncadd [#allocation9], 0
      %s45 = sshll.u32 %s2, 4
      %s46 = int_to_ptr.hbm [resolvable:$true] %s45
      %s47 = sshll.u32 [#allocation10], 4
      %s48 = int_to_ptr.vmem [resolvable:$true] %s47
      %53 = dma.hbm_to_vmem [thread:$0]  %s46, 8192, %s48, [#allocation9], 512, 512, 32
    $region13: #{tpu_custom_call.1} parent=1 // pred_fallthru
      _
    // Predicated region
    $region14: #{tpu_custom_call.1} parent=1 // pred_check
      _
    $region15: #{tpu_custom_call.1} parent=1 // pred_check_branch
      %55 = sbr.rel (0) target = $region17
    $region16: #{tpu_custom_call.1} parent=1 // pred_region
      _
    $region17: #{tpu_custom_call.1} parent=1 // pred_fallthru
      _
    // Predicated region
    $region18: #{tpu_custom_call.1} parent=1 // pred_check
      _
    $region19: #{tpu_custom_call.1} parent=1 // pred_check_branch
      %57 = sbr.rel (0) target = $region21
    $region20: #{tpu_custom_call.1} parent=1 // pred_region
      _
    $region21: #{tpu_custom_call.1} parent=1 // pred_fallthru
      _
    // Predicated region
    $region22: #{tpu_custom_call.1} parent=1 // pred_check
      _
    $region23: #{tpu_custom_call.1} parent=1 // pred_check_branch
      %59 = sbr.rel (0) target = $region25
    $region24: #{tpu_custom_call.1} parent=1 // pred_region
      _
    $region25: #{tpu_custom_call.1} parent=1 // pred_fallthru
      _
    // Predicated region
    $region26: #{tpu_custom_call.1} parent=1 // pred_check
      _
    $region27: #{tpu_custom_call.1} parent=1 // pred_check_branch
      %61 = sbr.rel (0) target = $region29
    $region28: #{tpu_custom_call.1} parent=1 // pred_region
      %63 = dma.done [#allocation7], 1024
    $region29: #{tpu_custom_call.1} parent=1 // pred_fallthru
      _
    // Predicated region
    $region30: #{tpu_custom_call.1} parent=1 // pred_check
      _
    $region31: #{tpu_custom_call.1} parent=1 // pred_check_branch
      %65 = sbr.rel (0) target = $region33
    $region32: #{tpu_custom_call.1} parent=1 // pred_region
      %67 = dma.done [#allocation9], 1024
    $region33: #{tpu_custom_call.1} parent=1 // pred_fallthru
      _
    // Predicated region
    $region34: #{tpu_custom_call.1} parent=1 // pred_check
      _
    $region35: #{tpu_custom_call.1} parent=1 // pred_check_branch
      %69 = sbr.rel (0) target = $region37
    $region36: #{tpu_custom_call.1} parent=1 // pred_region
      %71 = dma.done [#allocation9], 8192
    $region37: #{tpu_custom_call.1} parent=1 // pred_fallthru
      _
    %p72 = scmp.eq.s32.totalorder 0, 0
    // Predicated region
    $region38: #{tpu_custom_call.1} parent=1 // pred_check
      %p73 = pneg %p72
    $region39: #{tpu_custom_call.1} parent=1 // pred_check_branch
      %75 = sbr.rel (%p73) target = $region41
    $region40: #{tpu_custom_call.1} parent=1 // pred_region
      %76 = vst [vmem:[#allocation2] sm:$0xff] 0.0
      %77 = vst [vmem:[#allocation3] sm:$0xff] 0.0
    $region41: #{tpu_custom_call.1} parent=1 // pred_fallthru
      _
    %v78 = vld [vmem:[#allocation6] sm:$0xff]
    %v79 = vld [vmem:[#allocation6 + $0x8] sm:$0xff]
    %v80 = vld [vmem:[#allocation6 + $0x10] sm:$0xff]
    %v81 = vld [vmem:[#allocation6 + $0x18] sm:$0xff]
    %v82 = vld [vmem:[#allocation6 + $0x20] sm:$0xff]
    %v83 = vld [vmem:[#allocation6 + $0x28] sm:$0xff]
    %v84 = vld [vmem:[#allocation6 + $0x30] sm:$0xff]
    %v85 = vld [vmem:[#allocation6 + $0x38] sm:$0xff]
    %v86 = vld [vmem:[#allocation8] sm:$0xff]
    %v87 = vld [vmem:[#allocation8 + $0x8] sm:$0xff]
    %v88 = vld [vmem:[#allocation8 + $0x10] sm:$0xff]
    %v89 = vld [vmem:[#allocation8 + $0x18] sm:$0xff]
    %v90 = vld [vmem:[#allocation8 + $0x20] sm:$0xff]
    %v91 = vld [vmem:[#allocation8 + $0x28] sm:$0xff]
    %v92 = vld [vmem:[#allocation8 + $0x30] sm:$0xff]
    %v93 = vld [vmem:[#allocation8 + $0x38] sm:$0xff]
    %v94 = vld [vmem:[%s3] sm:$0xf]
    %v96 = vperm.slane %v94, 0
    %v97 = vperm.slane %v94, 1
    %v98 = vperm.slane %v94, 2
    %v99 = vperm.slane %v94, 3
    %vm104 = vcmask 130048
    %v106 = vsel %vm104, %v78, 0
    %v109 = vsel %vm104, %v79, 0
    %v112 = vsel %vm104, %v80, 0
    %v115 = vsel %vm104, %v81, 0
    %v118 = vsel %vm104, %v82, 0
    %v121 = vsel %vm104, %v83, 0
    %v124 = vsel %vm104, %v84, 0
    %v127 = vsel %vm104, %v85, 0
    %129 = vmatpush.msra.mxu0 0.0
    %130 = vmatpush.msra.mxu0 0.0
    %131 = vmatpush.msra.mxu0 0.0
    %132 = vmatpush.msra.mxu0 0.0
    %133 = vmatpush.msra.mxu0 0.0
    %134 = vmatpush.msra.mxu0 0.0
    %135 = vmatpush.msra.mxu0 0.0
    %136 = vmatpush.msra.mxu0 0.0
    %137 = vmatpush.msra.mxu0 0.0
    %138 = vmatpush.msra.mxu0 0.0
    %139 = vmatpush.msra.mxu0 0.0
    %140 = vmatpush.msra.mxu0 0.0
    %141 = vmatpush.msra.mxu0 0.0
    %142 = vmatpush.msra.mxu0 0.0
    %143 = vmatpush.msra.mxu0 %v90
    %144 = vmatpush.msra.mxu0 %v86
    %145 = vmatmul.f32.gmra.mxu0 %v106
    %v146 = vpop.f32.mrf.mxu0
    %v147 = vadd.f32 %v96, %v146
    %148 = vmatmul.f32.gmra.mxu0 %v109
    %v149 = vpop.f32.mrf.mxu0
    %v150 = vadd.f32 %v96, %v149
    %151 = vmatmul.f32.gmra.mxu0 %v112
    %v152 = vpop.f32.mrf.mxu0
    %v153 = vadd.f32 %v96, %v152
    %154 = vmatmul.f32.gmra.mxu0 %v115
    %v155 = vpop.f32.mrf.mxu0
    %v156 = vadd.f32 %v96, %v155
    %157 = vmatmul.f32.gmra.mxu0 %v118
    %v158 = vpop.f32.mrf.mxu0
    %v159 = vadd.f32 %v96, %v158
    %160 = vmatmul.f32.gmra.mxu0 %v121
    %v161 = vpop.f32.mrf.mxu0
    %v162 = vadd.f32 %v96, %v161
    %163 = vmatmul.f32.gmra.mxu0 %v124
    %v164 = vpop.f32.mrf.mxu0
    %v165 = vadd.f32 %v96, %v164
    %166 = vmatmul.f32.gmra.mxu0 %v127
    %v167 = vpop.f32.mrf.mxu0
    %v168 = vadd.f32 %v96, %v167
    %169 = vdwg.mxu0
    %170 = vmatpush.msra.mxu0 0.0
    %171 = vmatpush.msra.mxu0 0.0
    %172 = vmatpush.msra.mxu0 0.0
    %173 = vmatpush.msra.mxu0 0.0
    %174 = vmatpush.msra.mxu0 0.0
    %175 = vmatpush.msra.mxu0 0.0
    %176 = vmatpush.msra.mxu0 0.0
    %177 = vmatpush.msra.mxu0 0.0
    %178 = vmatpush.msra.mxu0 0.0
    %179 = vmatpush.msra.mxu0 0.0
    %180 = vmatpush.msra.mxu0 0.0
    %181 = vmatpush.msra.mxu0 0.0
    %182 = vmatpush.msra.mxu0 0.0
    %183 = vmatpush.msra.mxu0 0.0
    %184 = vmatpush.msra.mxu0 %v91
    %185 = vmatpush.msra.mxu0 %v87
    %186 = vmatmul.f32.gmra.mxu0 %v106
    %v187 = vpop.f32.mrf.mxu0
    %v188 = vadd.f32 %v97, %v187
    %189 = vmatmul.f32.gmra.mxu0 %v109
    %v190 = vpop.f32.mrf.mxu0
    %v191 = vadd.f32 %v97, %v190
    %192 = vmatmul.f32.gmra.mxu0 %v112
    %v193 = vpop.f32.mrf.mxu0
    %v194 = vadd.f32 %v97, %v193
    %195 = vmatmul.f32.gmra.mxu0 %v115
    %v196 = vpop.f32.mrf.mxu0
    %v197 = vadd.f32 %v97, %v196
    %198 = vmatmul.f32.gmra.mxu0 %v118
    %v199 = vpop.f32.mrf.mxu0
    %v200 = vadd.f32 %v97, %v199
    %201 = vmatmul.f32.gmra.mxu0 %v121
    %v202 = vpop.f32.mrf.mxu0
    %v203 = vadd.f32 %v97, %v202
    %204 = vmatmul.f32.gmra.mxu0 %v124
    %v205 = vpop.f32.mrf.mxu0
    %v206 = vadd.f32 %v97, %v205
    %207 = vmatmul.f32.gmra.mxu0 %v127
    %v208 = vpop.f32.mrf.mxu0
    %v209 = vadd.f32 %v97, %v208
    %210 = vdwg.mxu0
    %211 = vmatpush.msra.mxu0 0.0
    %212 = vmatpush.msra.mxu0 0.0
    %213 = vmatpush.msra.mxu0 0.0
    %214 = vmatpush.msra.mxu0 0.0
    %215 = vmatpush.msra.mxu0 0.0
    %216 = vmatpush.msra.mxu0 0.0
    %217 = vmatpush.msra.mxu0 0.0
    %218 = vmatpush.msra.mxu0 0.0
    %219 = vmatpush.msra.mxu0 0.0
    %220 = vmatpush.msra.mxu0 0.0
    %221 = vmatpush.msra.mxu0 0.0
    %222 = vmatpush.msra.mxu0 0.0
    %223 = vmatpush.msra.mxu0 0.0
    %224 = vmatpush.msra.mxu0 0.0
    %225 = vmatpush.msra.mxu0 %v92
    %226 = vmatpush.msra.mxu0 %v88
    %227 = vmatmul.f32.gmra.mxu0 %v106
    %v228 = vpop.f32.mrf.mxu0
    %v229 = vadd.f32 %v98, %v228
    %230 = vmatmul.f32.gmra.mxu0 %v109
    %v231 = vpop.f32.mrf.mxu0
    %v232 = vadd.f32 %v98, %v231
    %233 = vmatmul.f32.gmra.mxu0 %v112
    %v234 = vpop.f32.mrf.mxu0
    %v235 = vadd.f32 %v98, %v234
    %236 = vmatmul.f32.gmra.mxu0 %v115
    %v237 = vpop.f32.mrf.mxu0
    %v238 = vadd.f32 %v98, %v237
    %239 = vmatmul.f32.gmra.mxu0 %v118
    %v240 = vpop.f32.mrf.mxu0
    %v241 = vadd.f32 %v98, %v240
    %242 = vmatmul.f32.gmra.mxu0 %v121
    %v243 = vpop.f32.mrf.mxu0
    %v244 = vadd.f32 %v98, %v243
    %245 = vmatmul.f32.gmra.mxu0 %v124
    %v246 = vpop.f32.mrf.mxu0
    %v247 = vadd.f32 %v98, %v246
    %248 = vmatmul.f32.gmra.mxu0 %v127
    %v249 = vpop.f32.mrf.mxu0
    %v250 = vadd.f32 %v98, %v249
    %251 = vdwg.mxu0
    %252 = vmatpush.msra.mxu0 0.0
    %253 = vmatpush.msra.mxu0 0.0
    %254 = vmatpush.msra.mxu0 0.0
    %255 = vmatpush.msra.mxu0 0.0
    %256 = vmatpush.msra.mxu0 0.0
    %257 = vmatpush.msra.mxu0 0.0
    %258 = vmatpush.msra.mxu0 0.0
    %259 = vmatpush.msra.mxu0 0.0
    %260 = vmatpush.msra.mxu0 0.0
    %261 = vmatpush.msra.mxu0 0.0
    %262 = vmatpush.msra.mxu0 0.0
    %263 = vmatpush.msra.mxu0 0.0
    %264 = vmatpush.msra.mxu0 0.0
    %265 = vmatpush.msra.mxu0 0.0
    %266 = vmatpush.msra.mxu0 %v93
    %267 = vmatpush.msra.mxu0 %v89
    %268 = vmatmul.f32.gmra.mxu0 %v106
    %v269 = vpop.f32.mrf.mxu0
    %v270 = vadd.f32 %v99, %v269
    %271 = vmatmul.f32.gmra.mxu0 %v109
    %v272 = vpop.f32.mrf.mxu0
    %v273 = vadd.f32 %v99, %v272
    %274 = vmatmul.f32.gmra.mxu0 %v112
    %v275 = vpop.f32.mrf.mxu0
    %v276 = vadd.f32 %v99, %v275
    %277 = vmatmul.f32.gmra.mxu0 %v115
    %v278 = vpop.f32.mrf.mxu0
    %v279 = vadd.f32 %v99, %v278
    %280 = vmatmul.f32.gmra.mxu0 %v118
    %v281 = vpop.f32.mrf.mxu0
    %v282 = vadd.f32 %v99, %v281
    %283 = vmatmul.f32.gmra.mxu0 %v121
    %v284 = vpop.f32.mrf.mxu0
    %v285 = vadd.f32 %v99, %v284
    %286 = vmatmul.f32.gmra.mxu0 %v124
    %v287 = vpop.f32.mrf.mxu0
    %v288 = vadd.f32 %v99, %v287
    %289 = vmatmul.f32.gmra.mxu0 %v127
    %v290 = vpop.f32.mrf.mxu0
    %v291 = vadd.f32 %v99, %v290
    %292 = vdwg.mxu0
    %293 = vst [vmem:[#allocation4] sm:$0xff] %v147
    %294 = vst [vmem:[#allocation4 + $0x8] sm:$0xff] %v188
    %295 = vst [vmem:[#allocation4 + $0x10] sm:$0xff] %v229
    %296 = vst [vmem:[#allocation4 + $0x18] sm:$0xff] %v270
    %297 = vst [vmem:[#allocation4 + $0x20] sm:$0xff] %v150
    %298 = vst [vmem:[#allocation4 + $0x28] sm:$0xff] %v191
    %299 = vst [vmem:[#allocation4 + $0x30] sm:$0xff] %v232
    %300 = vst [vmem:[#allocation4 + $0x38] sm:$0xff] %v273
    %301 = vst [vmem:[#allocation4 + $0x40] sm:$0xff] %v153
    %302 = vst [vmem:[#allocation4 + $0x48] sm:$0xff] %v194
    %303 = vst [vmem:[#allocation4 + $0x50] sm:$0xff] %v235
    %304 = vst [vmem:[#allocation4 + $0x58] sm:$0xff] %v276
    %305 = vst [vmem:[#allocation4 + $0x60] sm:$0xff] %v156
    %306 = vst [vmem:[#allocation4 + $0x68] sm:$0xff] %v197
    %307 = vst [vmem:[#allocation4 + $0x70] sm:$0xff] %v238
    %308 = vst [vmem:[#allocation4 + $0x78] sm:$0xff] %v279
    %309 = vst [vmem:[#allocation4 + $0x80] sm:$0xff] %v159
    %310 = vst [vmem:[#allocation4 + $0x88] sm:$0xff] %v200
    %311 = vst [vmem:[#allocation4 + $0x90] sm:$0xff] %v241
    %312 = vst [vmem:[#allocation4 + $0x98] sm:$0xff] %v282
    %313 = vst [vmem:[#allocation4 + $0xa0] sm:$0xff] %v162
    %314 = vst [vmem:[#allocation4 + $0xa8] sm:$0xff] %v203
    %315 = vst [vmem:[#allocation4 + $0xb0] sm:$0xff] %v244
    %316 = vst [vmem:[#allocation4 + $0xb8] sm:$0xff] %v285
    %317 = vst [vmem:[#allocation4 + $0xc0] sm:$0xff] %v165
    %318 = vst [vmem:[#allocation4 + $0xc8] sm:$0xff] %v206
    %319 = vst [vmem:[#allocation4 + $0xd0] sm:$0xff] %v247
    %320 = vst [vmem:[#allocation4 + $0xd8] sm:$0xff] %v288
    %321 = vst [vmem:[#allocation4 + $0xe0] sm:$0xff] %v168
    %322 = vst [vmem:[#allocation4 + $0xe8] sm:$0xff] %v209
    %323 = vst [vmem:[#allocation4 + $0xf0] sm:$0xff] %v250
    %324 = vst [vmem:[#allocation4 + $0xf8] sm:$0xff] %v291
    %v325 = vld [vmem:[#allocation2] sm:$0xff]
    %v326 = vld [vmem:[#allocation3] sm:$0xff]
    %v327 = vld [vmem:[#allocation4] sm:$0xff]
    %v328 = vld [vmem:[#allocation4 + $0x8] sm:$0xff]
    %v329 = vld [vmem:[#allocation4 + $0x10] sm:$0xff]
    %v330 = vld [vmem:[#allocation4 + $0x18] sm:$0xff]
    %v331 = vld [vmem:[#allocation10] sm:$0xff]
    %v332 = vld [vmem:[#allocation10 + $0x8] sm:$0xff]
    %v333 = vld [vmem:[#allocation10 + $0x10] sm:$0xff]
    %v334 = vld [vmem:[#allocation10 + $0x18] sm:$0xff]
    %v335 = vld [vmem:[#allocation10 + $0x20] sm:$0xff]
    %v336 = vld [vmem:[#allocation10 + $0x28] sm:$0xff]
    %v337 = vld [vmem:[#allocation10 + $0x30] sm:$0xff]
    %v338 = vld [vmem:[#allocation10 + $0x38] sm:$0xff]
    %v339 = vld [vmem:[#allocation10 + $0x40] sm:$0xff]
    %v340 = vld [vmem:[#allocation10 + $0x48] sm:$0xff]
    %v341 = vld [vmem:[#allocation10 + $0x50] sm:$0xff]
    %v342 = vld [vmem:[#allocation10 + $0x58] sm:$0xff]
    %v343 = vld [vmem:[#allocation10 + $0x60] sm:$0xff]
    %v344 = vld [vmem:[#allocation10 + $0x68] sm:$0xff]
    %v345 = vld [vmem:[#allocation10 + $0x70] sm:$0xff]
    %v346 = vld [vmem:[#allocation10 + $0x78] sm:$0xff]
    %v347 = vld [vmem:[#allocation10 + $0x80] sm:$0xff]
    %v348 = vld [vmem:[#allocation10 + $0x88] sm:$0xff]
    %v349 = vld [vmem:[#allocation10 + $0x90] sm:$0xff]
    %v350 = vld [vmem:[#allocation10 + $0x98] sm:$0xff]
    %v351 = vld [vmem:[#allocation10 + $0xa0] sm:$0xff]
    %v352 = vld [vmem:[#allocation10 + $0xa8] sm:$0xff]
    %v353 = vld [vmem:[#allocation10 + $0xb0] sm:$0xff]
    %v354 = vld [vmem:[#allocation10 + $0xb8] sm:$0xff]
    %v355 = vld [vmem:[#allocation10 + $0xc0] sm:$0xff]
    %v356 = vld [vmem:[#allocation10 + $0xc8] sm:$0xff]
    %v357 = vld [vmem:[#allocation10 + $0xd0] sm:$0xff]
    %v358 = vld [vmem:[#allocation10 + $0xd8] sm:$0xff]
    %v359 = vld [vmem:[#allocation10 + $0xe0] sm:$0xff]
    %v360 = vld [vmem:[#allocation10 + $0xe8] sm:$0xff]
    %v361 = vld [vmem:[#allocation10 + $0xf0] sm:$0xff]
    %v362 = vld [vmem:[#allocation10 + $0xf8] sm:$0xff]
    %v363 = vld [vmem:[#allocation10 + $0x100] sm:$0xff]
    %v364 = vld [vmem:[#allocation10 + $0x108] sm:$0xff]
    %v365 = vld [vmem:[#allocation10 + $0x110] sm:$0xff]
    %v366 = vld [vmem:[#allocation10 + $0x118] sm:$0xff]
    %v367 = vld [vmem:[#allocation10 + $0x120] sm:$0xff]
    %v368 = vld [vmem:[#allocation10 + $0x128] sm:$0xff]
    %v369 = vld [vmem:[#allocation10 + $0x130] sm:$0xff]
    %v370 = vld [vmem:[#allocation10 + $0x138] sm:$0xff]
    %v371 = vld [vmem:[#allocation10 + $0x140] sm:$0xff]
    %v372 = vld [vmem:[#allocation10 + $0x148] sm:$0xff]
    %v373 = vld [vmem:[#allocation10 + $0x150] sm:$0xff]
    %v374 = vld [vmem:[#allocation10 + $0x158] sm:$0xff]
    %v375 = vld [vmem:[#allocation10 + $0x160] sm:$0xff]
    %v376 = vld [vmem:[#allocation10 + $0x168] sm:$0xff]
    %v377 = vld [vmem:[#allocation10 + $0x170] sm:$0xff]
    %v378 = vld [vmem:[#allocation10 + $0x178] sm:$0xff]
    %v379 = vld [vmem:[#allocation10 + $0x180] sm:$0xff]
    %v380 = vld [vmem:[#allocation10 + $0x188] sm:$0xff]
    %v381 = vld [vmem:[#allocation10 + $0x190] sm:$0xff]
    %v382 = vld [vmem:[#allocation10 + $0x198] sm:$0xff]
    %v383 = vld [vmem:[#allocation10 + $0x1a0] sm:$0xff]
    %v384 = vld [vmem:[#allocation10 + $0x1a8] sm:$0xff]
    %v385 = vld [vmem:[#allocation10 + $0x1b0] sm:$0xff]
    %v386 = vld [vmem:[#allocation10 + $0x1b8] sm:$0xff]
    %v387 = vld [vmem:[#allocation10 + $0x1c0] sm:$0xff]
    %v388 = vld [vmem:[#allocation10 + $0x1c8] sm:$0xff]
    %v389 = vld [vmem:[#allocation10 + $0x1d0] sm:$0xff]
    %v390 = vld [vmem:[#allocation10 + $0x1d8] sm:$0xff]
    %v391 = vld [vmem:[#allocation10 + $0x1e0] sm:$0xff]
    %v392 = vld [vmem:[#allocation10 + $0x1e8] sm:$0xff]
    %v393 = vld [vmem:[#allocation10 + $0x1f0] sm:$0xff]
    %v394 = vld [vmem:[#allocation10 + $0x1f8] sm:$0xff]
    %395 = vmatpush.msra.mxu0 %v391
    %396 = vmatpush.msra.mxu0 %v387
    %397 = vmatpush.msra.mxu0 %v383
    %398 = vmatpush.msra.mxu0 %v379
    %399 = vmatpush.msra.mxu0 %v375
    %400 = vmatpush.msra.mxu0 %v371
    %401 = vmatpush.msra.mxu0 %v367
    %402 = vmatpush.msra.mxu0 %v363
    %403 = vmatpush.msra.mxu0 %v359
    %404 = vmatpush.msra.mxu0 %v355
    %405 = vmatpush.msra.mxu0 %v351
    %406 = vmatpush.msra.mxu0 %v347
    %407 = vmatpush.msra.mxu0 %v343
    %408 = vmatpush.msra.mxu0 %v339
    %409 = vmatpush.msra.mxu0 %v335
    %410 = vmatpush.msra.mxu0 %v331
    %411 = vmatmul.f32.gmra.mxu0 %v325
    %v412 = vpop.f32.mrf.mxu0
    %v413 = vadd.f32 0.0, %v412
    %414 = vdwg.mxu0
    %415 = vmatpush.msra.mxu0 %v392
    %416 = vmatpush.msra.mxu0 %v388
    %417 = vmatpush.msra.mxu0 %v384
    %418 = vmatpush.msra.mxu0 %v380
    %419 = vmatpush.msra.mxu0 %v376
    %420 = vmatpush.msra.mxu0 %v372
    %421 = vmatpush.msra.mxu0 %v368
    %422 = vmatpush.msra.mxu0 %v364
    %423 = vmatpush.msra.mxu0 %v360
    %424 = vmatpush.msra.mxu0 %v356
    %425 = vmatpush.msra.mxu0 %v352
    %426 = vmatpush.msra.mxu0 %v348
    %427 = vmatpush.msra.mxu0 %v344
    %428 = vmatpush.msra.mxu0 %v340
    %429 = vmatpush.msra.mxu0 %v336
    %430 = vmatpush.msra.mxu0 %v332
    %431 = vmatmul.f32.gmra.mxu0 %v325
    %v432 = vpop.f32.mrf.mxu0
    %v433 = vadd.f32 0.0, %v432
    %434 = vdwg.mxu0
    %435 = vmatpush.msra.mxu0 %v393
    %436 = vmatpush.msra.mxu0 %v389
    %437 = vmatpush.msra.mxu0 %v385
    %438 = vmatpush.msra.mxu0 %v381
    %439 = vmatpush.msra.mxu0 %v377
    %440 = vmatpush.msra.mxu0 %v373
    %441 = vmatpush.msra.mxu0 %v369
    %442 = vmatpush.msra.mxu0 %v365
    %443 = vmatpush.msra.mxu0 %v361
    %444 = vmatpush.msra.mxu0 %v357
    %445 = vmatpush.msra.mxu0 %v353
    %446 = vmatpush.msra.mxu0 %v349
    %447 = vmatpush.msra.mxu0 %v345
    %448 = vmatpush.msra.mxu0 %v341
    %449 = vmatpush.msra.mxu0 %v337
    %450 = vmatpush.msra.mxu0 %v333
    %451 = vmatmul.f32.gmra.mxu0 %v325
    %v452 = vpop.f32.mrf.mxu0
    %v453 = vadd.f32 0.0, %v452
    %454 = vdwg.mxu0
    %455 = vmatpush.msra.mxu0 %v394
    %456 = vmatpush.msra.mxu0 %v390
    %457 = vmatpush.msra.mxu0 %v386
    %458 = vmatpush.msra.mxu0 %v382
    %459 = vmatpush.msra.mxu0 %v378
    %460 = vmatpush.msra.mxu0 %v374
    %461 = vmatpush.msra.mxu0 %v370
    %462 = vmatpush.msra.mxu0 %v366
    %463 = vmatpush.msra.mxu0 %v362
    %464 = vmatpush.msra.mxu0 %v358
    %465 = vmatpush.msra.mxu0 %v354
    %466 = vmatpush.msra.mxu0 %v350
    %467 = vmatpush.msra.mxu0 %v346
    %468 = vmatpush.msra.mxu0 %v342
    %469 = vmatpush.msra.mxu0 %v338
    %470 = vmatpush.msra.mxu0 %v334
    %471 = vmatmul.f32.gmra.mxu0 %v325
    %v472 = vpop.f32.mrf.mxu0
    %v473 = vadd.f32 0.0, %v472
    %474 = vdwg.mxu0
    %v475 = vadd.f32 %v327, %v413
    %v476 = vadd.f32 %v328, %v433
    %v477 = vadd.f32 %v329, %v453
    %v478 = vadd.f32 %v330, %v473
    %v479 = vxor.u32 %v475, 2147483648
    %v480 = vmul.f32 %v479, 1.442695
    %v481 = vpow.pop %v480
    %v482 = vadd.f32 %v481, 1.0
    %v483 = vrcp.pop %v482
    %v484 = vmul.f32 %v482, %v483
    %v485 = vsub.f32 1.0, %v484
    %v486 = vmul.f32 %v483, %v485
    %v487 = vadd.f32 %v483, %v486
    %vm488 = vweird.f32 %v482
    %vm489 = vweird.f32 %v483
    %vm490 = vmor %vm488, %vm489
    %v491 = vsel %vm490, %v483, %v487
    %v492 = vand.u32 2147483647, %v482
    %vm493 = vcmp.eq.f32.partialorder %v492, 8.507059e+37
    %v494 = vand.u32 %v482, 2147483648
    %v495 = vor.u32 1.1754944e-38, %v494
    %v496 = vsel %vm493, %v495, %v491
    %v497 = vmul.f32 1.0, %v496
    %v498 = vxor.u32 %v476, 2147483648
    %v499 = vmul.f32 %v498, 1.442695
    %v500 = vpow.pop %v499
    %v501 = vadd.f32 %v500, 1.0
    %v502 = vrcp.pop %v501
    %v503 = vmul.f32 %v501, %v502
    %v504 = vsub.f32 1.0, %v503
    %v505 = vmul.f32 %v502, %v504
    %v506 = vadd.f32 %v502, %v505
    %vm507 = vweird.f32 %v501
    %vm508 = vweird.f32 %v502
    %vm509 = vmor %vm507, %vm508
    %v510 = vsel %vm509, %v502, %v506
    %v511 = vand.u32 2147483647, %v501
    %vm512 = vcmp.eq.f32.partialorder %v511, 8.507059e+37
    %v513 = vand.u32 %v501, 2147483648
    %v514 = vor.u32 1.1754944e-38, %v513
    %v515 = vsel %vm512, %v514, %v510
    %v516 = vmul.f32 1.0, %v515
    %v517 = vtanh.pop %v477
    %v518 = vxor.u32 %v478, 2147483648
    %v519 = vmul.f32 %v518, 1.442695
    %v520 = vpow.pop %v519
    %v521 = vadd.f32 %v520, 1.0
    %v522 = vrcp.pop %v521
    %v523 = vmul.f32 %v521, %v522
    %v524 = vsub.f32 1.0, %v523
    %v525 = vmul.f32 %v522, %v524
    %v526 = vadd.f32 %v522, %v525
    %vm527 = vweird.f32 %v521
    %vm528 = vweird.f32 %v522
    %vm529 = vmor %vm527, %vm528
    %v530 = vsel %vm529, %v522, %v526
    %v531 = vand.u32 2147483647, %v521
    %vm532 = vcmp.eq.f32.partialorder %v531, 8.507059e+37
    %v533 = vand.u32 %v521, 2147483648
    %v534 = vor.u32 1.1754944e-38, %v533
    %v535 = vsel %vm532, %v534, %v530
    %v536 = vmul.f32 1.0, %v535
    %v537 = vmul.f32 %v516, %v326
    %v538 = vmul.f32 %v497, %v517
    %v539 = vadd.f32 %v537, %v538
    %540 = vst [vmem:[#allocation3] sm:$0xff] %v539
    %v541 = vtanh.pop %v539
    %v542 = vmul.f32 %v536, %v541
    %543 = vst [vmem:[#allocation2] sm:$0xff] %v542
    %v544 = vld [vmem:[#allocation2] sm:$0xff]
    %v545 = vld [vmem:[#allocation3] sm:$0xff]
    %v546 = vld [vmem:[#allocation4 + $0x20] sm:$0xff]
    %v547 = vld [vmem:[#allocation4 + $0x28] sm:$0xff]
    %v548 = vld [vmem:[#allocation4 + $0x30] sm:$0xff]
    %v549 = vld [vmem:[#allocation4 + $0x38] sm:$0xff]
    %v550 = vld [vmem:[#allocation10] sm:$0xff]
    %v551 = vld [vmem:[#allocation10 + $0x8] sm:$0xff]
    %v552 = vld [vmem:[#allocation10 + $0x10] sm:$0xff]
    %v553 = vld [vmem:[#allocation10 + $0x18] sm:$0xff]
    %v554 = vld [vmem:[#allocation10 + $0x20] sm:$0xff]
    %v555 = vld [vmem:[#allocation10 + $0x28] sm:$0xff]
    %v556 = vld [vmem:[#allocation10 + $0x30] sm:$0xff]
    %v557 = vld [vmem:[#allocation10 + $0x38] sm:$0xff]
    %v558 = vld [vmem:[#allocation10 + $0x40] sm:$0xff]
    %v559 = vld [vmem:[#allocation10 + $0x48] sm:$0xff]
    %v560 = vld [vmem:[#allocation10 + $0x50] sm:$0xff]
    %v561 = vld [vmem:[#allocation10 + $0x58] sm:$0xff]
    %v562 = vld [vmem:[#allocation10 + $0x60] sm:$0xff]
    %v563 = vld [vmem:[#allocation10 + $0x68] sm:$0xff]
    %v564 = vld [vmem:[#allocation10 + $0x70] sm:$0xff]
    %v565 = vld [vmem:[#allocation10 + $0x78] sm:$0xff]
    %v566 = vld [vmem:[#allocation10 + $0x80] sm:$0xff]
    %v567 = vld [vmem:[#allocation10 + $0x88] sm:$0xff]
    %v568 = vld [vmem:[#allocation10 + $0x90] sm:$0xff]
    %v569 = vld [vmem:[#allocation10 + $0x98] sm:$0xff]
    %v570 = vld [vmem:[#allocation10 + $0xa0] sm:$0xff]
    %v571 = vld [vmem:[#allocation10 + $0xa8] sm:$0xff]
    %v572 = vld [vmem:[#allocation10 + $0xb0] sm:$0xff]
    %v573 = vld [vmem:[#allocation10 + $0xb8] sm:$0xff]
    %v574 = vld [vmem:[#allocation10 + $0xc0] sm:$0xff]
    %v575 = vld [vmem:[#allocation10 + $0xc8] sm:$0xff]
    %v576 = vld [vmem:[#allocation10 + $0xd0] sm:$0xff]
    %v577 = vld [vmem:[#allocation10 + $0xd8] sm:$0xff]
    %v578 = vld [vmem:[#allocation10 + $0xe0] sm:$0xff]
    %v579 = vld [vmem:[#allocation10 + $0xe8] sm:$0xff]
    %v580 = vld [vmem:[#allocation10 + $0xf0] sm:$0xff]
    %v581 = vld [vmem:[#allocation10 + $0xf8] sm:$0xff]
    %v582 = vld [vmem:[#allocation10 + $0x100] sm:$0xff]
    %v583 = vld [vmem:[#allocation10 + $0x108] sm:$0xff]
    %v584 = vld [vmem:[#allocation10 + $0x110] sm:$0xff]
    %v585 = vld [vmem:[#allocation10 + $0x118] sm:$0xff]
    %v586 = vld [vmem:[#allocation10 + $0x120] sm:$0xff]
    %v587 = vld [vmem:[#allocation10 + $0x128] sm:$0xff]
    %v588 = vld [vmem:[#allocation10 + $0x130] sm:$0xff]
    %v589 = vld [vmem:[#allocation10 + $0x138] sm:$0xff]
    %v590 = vld [vmem:[#allocation10 + $0x140] sm:$0xff]
    %v591 = vld [vmem:[#allocation10 + $0x148] sm:$0xff]
    %v592 = vld [vmem:[#allocation10 + $0x150] sm:$0xff]
    %v593 = vld [vmem:[#allocation10 + $0x158] sm:$0xff]
    %v594 = vld [vmem:[#allocation10 + $0x160] sm:$0xff]
    %v595 = vld [vmem:[#allocation10 + $0x168] sm:$0xff]
    %v596 = vld [vmem:[#allocation10 + $0x170] sm:$0xff]
    %v597 = vld [vmem:[#allocation10 + $0x178] sm:$0xff]
    %v598 = vld [vmem:[#allocation10 + $0x180] sm:$0xff]
    %v599 = vld [vmem:[#allocation10 + $0x188] sm:$0xff]
    %v600 = vld [vmem:[#allocation10 + $0x190] sm:$0xff]
    %v601 = vld [vmem:[#allocation10 + $0x198] sm:$0xff]
    %v602 = vld [vmem:[#allocation10 + $0x1a0] sm:$0xff]
    %v603 = vld [vmem:[#allocation10 + $0x1a8] sm:$0xff]
    %v604 = vld [vmem:[#allocation10 + $0x1b0] sm:$0xff]
    %v605 = vld [vmem:[#allocation10 + $0x1b8] sm:$0xff]
    %v606 = vld [vmem:[#allocation10 + $0x1c0] sm:$0xff]
    %v607 = vld [vmem:[#allocation10 + $0x1c8] sm:$0xff]
    %v608 = vld [vmem:[#allocation10 + $0x1d0] sm:$0xff]
    %v609 = vld [vmem:[#allocation10 + $0x1d8] sm:$0xff]
    %v610 = vld [vmem:[#allocation10 + $0x1e0] sm:$0xff]
    %v611 = vld [vmem:[#allocation10 + $0x1e8] sm:$0xff]
    %v612 = vld [vmem:[#allocation10 + $0x1f0] sm:$0xff]
    %v613 = vld [vmem:[#allocation10 + $0x1f8] sm:$0xff]
    %614 = vmatpush.msra.mxu0 %v610
    %615 = vmatpush.msra.mxu0 %v606
    %616 = vmatpush.msra.mxu0 %v602
    %617 = vmatpush.msra.mxu0 %v598
    %618 = vmatpush.msra.mxu0 %v594
    %619 = vmatpush.msra.mxu0 %v590
    %620 = vmatpush.msra.mxu0 %v586
    %621 = vmatpush.msra.mxu0 %v582
    %622 = vmatpush.msra.mxu0 %v578
    %623 = vmatpush.msra.mxu0 %v574
    %624 = vmatpush.msra.mxu0 %v570
    %625 = vmatpush.msra.mxu0 %v566
    %626 = vmatpush.msra.mxu0 %v562
    %627 = vmatpush.msra.mxu0 %v558
    %628 = vmatpush.msra.mxu0 %v554
    %629 = vmatpush.msra.mxu0 %v550
    %630 = vmatmul.f32.gmra.mxu0 %v544
    %v631 = vpop.f32.mrf.mxu0
    %v632 = vadd.f32 0.0, %v631
    %633 = vdwg.mxu0
    %634 = vmatpush.msra.mxu0 %v611
    %635 = vmatpush.msra.mxu0 %v607
    %636 = vmatpush.msra.mxu0 %v603
    %637 = vmatpush.msra.mxu0 %v599
    %638 = vmatpush.msra.mxu0 %v595
    %639 = vmatpush.msra.mxu0 %v591
    %640 = vmatpush.msra.mxu0 %v587
    %641 = vmatpush.msra.mxu0 %v583
    %642 = vmatpush.msra.mxu0 %v579
    %643 = vmatpush.msra.mxu0 %v575
    %644 = vmatpush.msra.mxu0 %v571
    %645 = vmatpush.msra.mxu0 %v567
    %646 = vmatpush.msra.mxu0 %v563
    %647 = vmatpush.msra.mxu0 %v559
    %648 = vmatpush.msra.mxu0 %v555
    %649 = vmatpush.msra.mxu0 %v551
    %650 = vmatmul.f32.gmra.mxu0 %v544
    %v651 = vpop.f32.mrf.mxu0
    %v652 = vadd.f32 0.0, %v651
    %653 = vdwg.mxu0
    %654 = vmatpush.msra.mxu0 %v612
    %655 = vmatpush.msra.mxu0 %v608
    %656 = vmatpush.msra.mxu0 %v604
    %657 = vmatpush.msra.mxu0 %v600
    %658 = vmatpush.msra.mxu0 %v596
    %659 = vmatpush.msra.mxu0 %v592
    %660 = vmatpush.msra.mxu0 %v588
    %661 = vmatpush.msra.mxu0 %v584
    %662 = vmatpush.msra.mxu0 %v580
    %663 = vmatpush.msra.mxu0 %v576
    %664 = vmatpush.msra.mxu0 %v572
    %665 = vmatpush.msra.mxu0 %v568
    %666 = vmatpush.msra.mxu0 %v564
    %667 = vmatpush.msra.mxu0 %v560
    %668 = vmatpush.msra.mxu0 %v556
    %669 = vmatpush.msra.mxu0 %v552
    %670 = vmatmul.f32.gmra.mxu0 %v544
    %v671 = vpop.f32.mrf.mxu0
    %v672 = vadd.f32 0.0, %v671
    %673 = vdwg.mxu0
    %674 = vmatpush.msra.mxu0 %v613
    %675 = vmatpush.msra.mxu0 %v609
    %676 = vmatpush.msra.mxu0 %v605
    %677 = vmatpush.msra.mxu0 %v601
    %678 = vmatpush.msra.mxu0 %v597
    %679 = vmatpush.msra.mxu0 %v593
    %680 = vmatpush.msra.mxu0 %v589
    %681 = vmatpush.msra.mxu0 %v585
    %682 = vmatpush.msra.mxu0 %v581
    %683 = vmatpush.msra.mxu0 %v577
    %684 = vmatpush.msra.mxu0 %v573
    %685 = vmatpush.msra.mxu0 %v569
    %686 = vmatpush.msra.mxu0 %v565
    %687 = vmatpush.msra.mxu0 %v561
    %688 = vmatpush.msra.mxu0 %v557
    %689 = vmatpush.msra.mxu0 %v553
    %690 = vmatmul.f32.gmra.mxu0 %v544
    %v691 = vpop.f32.mrf.mxu0
    %v692 = vadd.f32 0.0, %v691
    %693 = vdwg.mxu0
    %v694 = vadd.f32 %v546, %v632
    %v695 = vadd.f32 %v547, %v652
    %v696 = vadd.f32 %v548, %v672
    %v697 = vadd.f32 %v549, %v692
    %v698 = vxor.u32 %v694, 2147483648
    %v699 = vmul.f32 %v698, 1.442695
    %v700 = vpow.pop %v699
    %v701 = vadd.f32 %v700, 1.0
    %v702 = vrcp.pop %v701
    %v703 = vmul.f32 %v701, %v702
    %v704 = vsub.f32 1.0, %v703
    %v705 = vmul.f32 %v702, %v704
    %v706 = vadd.f32 %v702, %v705
    %vm707 = vweird.f32 %v701
    %vm708 = vweird.f32 %v702
    %vm709 = vmor %vm707, %vm708
    %v710 = vsel %vm709, %v702, %v706
    %v711 = vand.u32 2147483647, %v701
    %vm712 = vcmp.eq.f32.partialorder %v711, 8.507059e+37
    %v713 = vand.u32 %v701, 2147483648
    %v714 = vor.u32 1.1754944e-38, %v713
    %v715 = vsel %vm712, %v714, %v710
    %v716 = vmul.f32 1.0, %v715
    %v717 = vxor.u32 %v695, 2147483648
    %v718 = vmul.f32 %v717, 1.442695
    %v719 = vpow.pop %v718
    %v720 = vadd.f32 %v719, 1.0
    %v721 = vrcp.pop %v720
    %v722 = vmul.f32 %v720, %v721
    %v723 = vsub.f32 1.0, %v722
    %v724 = vmul.f32 %v721, %v723
    %v725 = vadd.f32 %v721, %v724
    %vm726 = vweird.f32 %v720
    %vm727 = vweird.f32 %v721
    %vm728 = vmor %vm726, %vm727
    %v729 = vsel %vm728, %v721, %v725
    %v730 = vand.u32 2147483647, %v720
    %vm731 = vcmp.eq.f32.partialorder %v730, 8.507059e+37
    %v732 = vand.u32 %v720, 2147483648
    %v733 = vor.u32 1.1754944e-38, %v732
    %v734 = vsel %vm731, %v733, %v729
    %v735 = vmul.f32 1.0, %v734
    %v736 = vtanh.pop %v696
    %v737 = vxor.u32 %v697, 2147483648
    %v738 = vmul.f32 %v737, 1.442695
    %v739 = vpow.pop %v738
    %v740 = vadd.f32 %v739, 1.0
    %v741 = vrcp.pop %v740
    %v742 = vmul.f32 %v740, %v741
    %v743 = vsub.f32 1.0, %v742
    %v744 = vmul.f32 %v741, %v743
    %v745 = vadd.f32 %v741, %v744
    %vm746 = vweird.f32 %v740
    %vm747 = vweird.f32 %v741
    %vm748 = vmor %vm746, %vm747
    %v749 = vsel %vm748, %v741, %v745
    %v750 = vand.u32 2147483647, %v740
    %vm751 = vcmp.eq.f32.partialorder %v750, 8.507059e+37
    %v752 = vand.u32 %v740, 2147483648
    %v753 = vor.u32 1.1754944e-38, %v752
    %v754 = vsel %vm751, %v753, %v749
    %v755 = vmul.f32 1.0, %v754
    %v756 = vmul.f32 %v735, %v545
    %v757 = vmul.f32 %v716, %v736
    %v758 = vadd.f32 %v756, %v757
    %759 = vst [vmem:[#allocation3] sm:$0xff] %v758
    %v760 = vtanh.pop %v758
    %v761 = vmul.f32 %v755, %v760
    %762 = vst [vmem:[#allocation2] sm:$0xff] %v761
    %v763 = vld [vmem:[#allocation2] sm:$0xff]
    %v764 = vld [vmem:[#allocation3] sm:$0xff]
    %v765 = vld [vmem:[#allocation4 + $0x40] sm:$0xff]
    %v766 = vld [vmem:[#allocation4 + $0x48] sm:$0xff]
    %v767 = vld [vmem:[#allocation4 + $0x50] sm:$0xff]
    %v768 = vld [vmem:[#allocation4 + $0x58] sm:$0xff]
    %v769 = vld [vmem:[#allocation10] sm:$0xff]
    %v770 = vld [vmem:[#allocation10 + $0x8] sm:$0xff]
    %v771 = vld [vmem:[#allocation10 + $0x10] sm:$0xff]
    %v772 = vld [vmem:[#allocation10 + $0x18] sm:$0xff]
    %v773 = vld [vmem:[#allocation10 + $0x20] sm:$0xff]
    %v774 = vld [vmem:[#allocation10 + $0x28] sm:$0xff]
    %v775 = vld [vmem:[#allocation10 + $0x30] sm:$0xff]
    %v776 = vld [vmem:[#allocation10 + $0x38] sm:$0xff]
    %v777 = vld [vmem:[#allocation10 + $0x40] sm:$0xff]
    %v778 = vld [vmem:[#allocation10 + $0x48] sm:$0xff]
    %v779 = vld [vmem:[#allocation10 + $0x50] sm:$0xff]
    %v780 = vld [vmem:[#allocation10 + $0x58] sm:$0xff]
    %v781 = vld [vmem:[#allocation10 + $0x60] sm:$0xff]
    %v782 = vld [vmem:[#allocation10 + $0x68] sm:$0xff]
    %v783 = vld [vmem:[#allocation10 + $0x70] sm:$0xff]
    %v784 = vld [vmem:[#allocation10 + $0x78] sm:$0xff]
    %v785 = vld [vmem:[#allocation10 + $0x80] sm:$0xff]
    %v786 = vld [vmem:[#allocation10 + $0x88] sm:$0xff]
    %v787 = vld [vmem:[#allocation10 + $0x90] sm:$0xff]
    %v788 = vld [vmem:[#allocation10 + $0x98] sm:$0xff]
    %v789 = vld [vmem:[#allocation10 + $0xa0] sm:$0xff]
    %v790 = vld [vmem:[#allocation10 + $0xa8] sm:$0xff]
    %v791 = vld [vmem:[#allocation10 + $0xb0] sm:$0xff]
    %v792 = vld [vmem:[#allocation10 + $0xb8] sm:$0xff]
    %v793 = vld [vmem:[#allocation10 + $0xc0] sm:$0xff]
    %v794 = vld [vmem:[#allocation10 + $0xc8] sm:$0xff]
    %v795 = vld [vmem:[#allocation10 + $0xd0] sm:$0xff]
    %v796 = vld [vmem:[#allocation10 + $0xd8] sm:$0xff]
    %v797 = vld [vmem:[#allocation10 + $0xe0] sm:$0xff]
    %v798 = vld [vmem:[#allocation10 + $0xe8] sm:$0xff]
    %v799 = vld [vmem:[#allocation10 + $0xf0] sm:$0xff]
    %v800 = vld [vmem:[#allocation10 + $0xf8] sm:$0xff]
    %v801 = vld [vmem:[#allocation10 + $0x100] sm:$0xff]
    %v802 = vld [vmem:[#allocation10 + $0x108] sm:$0xff]
    %v803 = vld [vmem:[#allocation10 + $0x110] sm:$0xff]
    %v804 = vld [vmem:[#allocation10 + $0x118] sm:$0xff]
    %v805 = vld [vmem:[#allocation10 + $0x120] sm:$0xff]
    %v806 = vld [vmem:[#allocation10 + $0x128] sm:$0xff]
    %v807 = vld [vmem:[#allocation10 + $0x130] sm:$0xff]
    %v808 = vld [vmem:[#allocation10 + $0x138] sm:$0xff]
    %v809 = vld [vmem:[#allocation10 + $0x140] sm:$0xff]
    %v810 = vld [vmem:[#allocation10 + $0x148] sm:$0xff]
    %v811 = vld [vmem:[#allocation10 + $0x150] sm:$0xff]
    %v812 = vld [vmem:[#allocation10 + $0x158] sm:$0xff]
    %v813 = vld [vmem:[#allocation10 + $0x160] sm:$0xff]
    %v814 = vld [vmem:[#allocation10 + $0x168] sm:$0xff]
    %v815 = vld [vmem:[#allocation10 + $0x170] sm:$0xff]
    %v816 = vld [vmem:[#allocation10 + $0x178] sm:$0xff]
    %v817 = vld [vmem:[#allocation10 + $0x180] sm:$0xff]
    %v818 = vld [vmem:[#allocation10 + $0x188] sm:$0xff]
    %v819 = vld [vmem:[#allocation10 + $0x190] sm:$0xff]
    %v820 = vld [vmem:[#allocation10 + $0x198] sm:$0xff]
    %v821 = vld [vmem:[#allocation10 + $0x1a0] sm:$0xff]
    %v822 = vld [vmem:[#allocation10 + $0x1a8] sm:$0xff]
    %v823 = vld [vmem:[#allocation10 + $0x1b0] sm:$0xff]
    %v824 = vld [vmem:[#allocation10 + $0x1b8] sm:$0xff]
    %v825 = vld [vmem:[#allocation10 + $0x1c0] sm:$0xff]
    %v826 = vld [vmem:[#allocation10 + $0x1c8] sm:$0xff]
    %v827 = vld [vmem:[#allocation10 + $0x1d0] sm:$0xff]
    %v828 = vld [vmem:[#allocation10 + $0x1d8] sm:$0xff]
    %v829 = vld [vmem:[#allocation10 + $0x1e0] sm:$0xff]
    %v830 = vld [vmem:[#allocation10 + $0x1e8] sm:$0xff]
    %v831 = vld [vmem:[#allocation10 + $0x1f0] sm:$0xff]
    %v832 = vld [vmem:[#allocation10 + $0x1f8] sm:$0xff]
    %833 = vmatpush.msra.mxu0 %v829
    %834 = vmatpush.msra.mxu0 %v825
    %835 = vmatpush.msra.mxu0 %v821
    %836 = vmatpush.msra.mxu0 %v817
    %837 = vmatpush.msra.mxu0 %v813
    %838 = vmatpush.msra.mxu0 %v809
    %839 = vmatpush.msra.mxu0 %v805
    %840 = vmatpush.msra.mxu0 %v801
    %841 = vmatpush.msra.mxu0 %v797
    %842 = vmatpush.msra.mxu0 %v793
    %843 = vmatpush.msra.mxu0 %v789
    %844 = vmatpush.msra.mxu0 %v785
    %845 = vmatpush.msra.mxu0 %v781
    %846 = vmatpush.msra.mxu0 %v777
    %847 = vmatpush.msra.mxu0 %v773
    %848 = vmatpush.msra.mxu0 %v769
    %849 = vmatmul.f32.gmra.mxu0 %v763
    %v850 = vpop.f32.mrf.mxu0
    %v851 = vadd.f32 0.0, %v850
    %852 = vdwg.mxu0
    %853 = vmatpush.msra.mxu0 %v830
    %854 = vmatpush.msra.mxu0 %v826
    %855 = vmatpush.msra.mxu0 %v822
    %856 = vmatpush.msra.mxu0 %v818
    %857 = vmatpush.msra.mxu0 %v814
    %858 = vmatpush.msra.mxu0 %v810
    %859 = vmatpush.msra.mxu0 %v806
    %860 = vmatpush.msra.mxu0 %v802
    %861 = vmatpush.msra.mxu0 %v798
    %862 = vmatpush.msra.mxu0 %v794
    %863 = vmatpush.msra.mxu0 %v790
    %864 = vmatpush.msra.mxu0 %v786
    %865 = vmatpush.msra.mxu0 %v782
    %866 = vmatpush.msra.mxu0 %v778
    %867 = vmatpush.msra.mxu0 %v774
    %868 = vmatpush.msra.mxu0 %v770
    %869 = vmatmul.f32.gmra.mxu0 %v763
    %v870 = vpop.f32.mrf.mxu0
    %v871 = vadd.f32 0.0, %v870
    %872 = vdwg.mxu0
    %873 = vmatpush.msra.mxu0 %v831
    %874 = vmatpush.msra.mxu0 %v827
    %875 = vmatpush.msra.mxu0 %v823
    %876 = vmatpush.msra.mxu0 %v819
    %877 = vmatpush.msra.mxu0 %v815
    %878 = vmatpush.msra.mxu0 %v811
    %879 = vmatpush.msra.mxu0 %v807
    %880 = vmatpush.msra.mxu0 %v803
    %881 = vmatpush.msra.mxu0 %v799
    %882 = vmatpush.msra.mxu0 %v795
    %883 = vmatpush.msra.mxu0 %v791
    %884 = vmatpush.msra.mxu0 %v787
    %885 = vmatpush.msra.mxu0 %v783
    %886 = vmatpush.msra.mxu0 %v779
    %887 = vmatpush.msra.mxu0 %v775
    %888 = vmatpush.msra.mxu0 %v771
    %889 = vmatmul.f32.gmra.mxu0 %v763
    %v890 = vpop.f32.mrf.mxu0
    %v891 = vadd.f32 0.0, %v890
    %892 = vdwg.mxu0
    %893 = vmatpush.msra.mxu0 %v832
    %894 = vmatpush.msra.mxu0 %v828
    %895 = vmatpush.msra.mxu0 %v824
    %896 = vmatpush.msra.mxu0 %v820
    %897 = vmatpush.msra.mxu0 %v816
    %898 = vmatpush.msra.mxu0 %v812
    %899 = vmatpush.msra.mxu0 %v808
    %900 = vmatpush.msra.mxu0 %v804
    %901 = vmatpush.msra.mxu0 %v800
    %902 = vmatpush.msra.mxu0 %v796
    %903 = vmatpush.msra.mxu0 %v792
    %904 = vmatpush.msra.mxu0 %v788
    %905 = vmatpush.msra.mxu0 %v784
    %906 = vmatpush.msra.mxu0 %v780
    %907 = vmatpush.msra.mxu0 %v776
    %908 = vmatpush.msra.mxu0 %v772
    %909 = vmatmul.f32.gmra.mxu0 %v763
    %v910 = vpop.f32.mrf.mxu0
    %v911 = vadd.f32 0.0, %v910
    %912 = vdwg.mxu0
    %v913 = vadd.f32 %v765, %v851
    %v914 = vadd.f32 %v766, %v871
    %v915 = vadd.f32 %v767, %v891
    %v916 = vadd.f32 %v768, %v911
    %v917 = vxor.u32 %v913, 2147483648
    %v918 = vmul.f32 %v917, 1.442695
    %v919 = vpow.pop %v918
    %v920 = vadd.f32 %v919, 1.0
    %v921 = vrcp.pop %v920
    %v922 = vmul.f32 %v920, %v921
    %v923 = vsub.f32 1.0, %v922
    %v924 = vmul.f32 %v921, %v923
    %v925 = vadd.f32 %v921, %v924
    %vm926 = vweird.f32 %v920
    %vm927 = vweird.f32 %v921
    %vm928 = vmor %vm926, %vm927
    %v929 = vsel %vm928, %v921, %v925
    %v930 = vand.u32 2147483647, %v920
    %vm931 = vcmp.eq.f32.partialorder %v930, 8.507059e+37
    %v932 = vand.u32 %v920, 2147483648
    %v933 = vor.u32 1.1754944e-38, %v932
    %v934 = vsel %vm931, %v933, %v929
    %v935 = vmul.f32 1.0, %v934
    %v936 = vxor.u32 %v914, 2147483648
    %v937 = vmul.f32 %v936, 1.442695
    %v938 = vpow.pop %v937
    %v939 = vadd.f32 %v938, 1.0
    %v940 = vrcp.pop %v939
    %v941 = vmul.f32 %v939, %v940
    %v942 = vsub.f32 1.0, %v941
    %v943 = vmul.f32 %v940, %v942
    %v944 = vadd.f32 %v940, %v943
    %vm945 = vweird.f32 %v939
    %vm946 = vweird.f32 %v940
    %vm947 = vmor %vm945, %vm946
    %v948 = vsel %vm947, %v940, %v944
    %v949 = vand.u32 2147483647, %v939
    %vm950 = vcmp.eq.f32.partialorder %v949, 8.507059e+37
    %v951 = vand.u32 %v939, 2147483648
    %v952 = vor.u32 1.1754944e-38, %v951
    %v953 = vsel %vm950, %v952, %v948
    %v954 = vmul.f32 1.0, %v953
    %v955 = vtanh.pop %v915
    %v956 = vxor.u32 %v916, 2147483648
    %v957 = vmul.f32 %v956, 1.442695
    %v958 = vpow.pop %v957
    %v959 = vadd.f32 %v958, 1.0
    %v960 = vrcp.pop %v959
    %v961 = vmul.f32 %v959, %v960
    %v962 = vsub.f32 1.0, %v961
    %v963 = vmul.f32 %v960, %v962
    %v964 = vadd.f32 %v960, %v963
    %vm965 = vweird.f32 %v959
    %vm966 = vweird.f32 %v960
    %vm967 = vmor %vm965, %vm966
    %v968 = vsel %vm967, %v960, %v964
    %v969 = vand.u32 2147483647, %v959
    %vm970 = vcmp.eq.f32.partialorder %v969, 8.507059e+37
    %v971 = vand.u32 %v959, 2147483648
    %v972 = vor.u32 1.1754944e-38, %v971
    %v973 = vsel %vm970, %v972, %v968
    %v974 = vmul.f32 1.0, %v973
    %v975 = vmul.f32 %v954, %v764
    %v976 = vmul.f32 %v935, %v955
    %v977 = vadd.f32 %v975, %v976
    %978 = vst [vmem:[#allocation3] sm:$0xff] %v977
    %v979 = vtanh.pop %v977
    %v980 = vmul.f32 %v974, %v979
    %981 = vst [vmem:[#allocation2] sm:$0xff] %v980
    %v982 = vld [vmem:[#allocation2] sm:$0xff]
    %v983 = vld [vmem:[#allocation3] sm:$0xff]
    %v984 = vld [vmem:[#allocation4 + $0x60] sm:$0xff]
    %v985 = vld [vmem:[#allocation4 + $0x68] sm:$0xff]
    %v986 = vld [vmem:[#allocation4 + $0x70] sm:$0xff]
    %v987 = vld [vmem:[#allocation4 + $0x78] sm:$0xff]
    %v988 = vld [vmem:[#allocation10] sm:$0xff]
    %v989 = vld [vmem:[#allocation10 + $0x8] sm:$0xff]
    %v990 = vld [vmem:[#allocation10 + $0x10] sm:$0xff]
    %v991 = vld [vmem:[#allocation10 + $0x18] sm:$0xff]
    %v992 = vld [vmem:[#allocation10 + $0x20] sm:$0xff]
    %v993 = vld [vmem:[#allocation10 + $0x28] sm:$0xff]
    %v994 = vld [vmem:[#allocation10 + $0x30] sm:$0xff]
    %v995 = vld [vmem:[#allocation10 + $0x38] sm:$0xff]
    %v996 = vld [vmem:[#allocation10 + $0x40] sm:$0xff]
    %v997 = vld [vmem:[#allocation10 + $0x48] sm:$0xff]
    %v998 = vld [vmem:[#allocation10 + $0x50] sm:$0xff]
    %v999 = vld [vmem:[#allocation10 + $0x58] sm:$0xff]
    %v1000 = vld [vmem:[#allocation10 + $0x60] sm:$0xff]
    %v1001 = vld [vmem:[#allocation10 + $0x68] sm:$0xff]
    %v1002 = vld [vmem:[#allocation10 + $0x70] sm:$0xff]
    %v1003 = vld [vmem:[#allocation10 + $0x78] sm:$0xff]
    %v1004 = vld [vmem:[#allocation10 + $0x80] sm:$0xff]
    %v1005 = vld [vmem:[#allocation10 + $0x88] sm:$0xff]
    %v1006 = vld [vmem:[#allocation10 + $0x90] sm:$0xff]
    %v1007 = vld [vmem:[#allocation10 + $0x98] sm:$0xff]
    %v1008 = vld [vmem:[#allocation10 + $0xa0] sm:$0xff]
    %v1009 = vld [vmem:[#allocation10 + $0xa8] sm:$0xff]
    %v1010 = vld [vmem:[#allocation10 + $0xb0] sm:$0xff]
    %v1011 = vld [vmem:[#allocation10 + $0xb8] sm:$0xff]
    %v1012 = vld [vmem:[#allocation10 + $0xc0] sm:$0xff]
    %v1013 = vld [vmem:[#allocation10 + $0xc8] sm:$0xff]
    %v1014 = vld [vmem:[#allocation10 + $0xd0] sm:$0xff]
    %v1015 = vld [vmem:[#allocation10 + $0xd8] sm:$0xff]
    %v1016 = vld [vmem:[#allocation10 + $0xe0] sm:$0xff]
    %v1017 = vld [vmem:[#allocation10 + $0xe8] sm:$0xff]
    %v1018 = vld [vmem:[#allocation10 + $0xf0] sm:$0xff]
    %v1019 = vld [vmem:[#allocation10 + $0xf8] sm:$0xff]
    %v1020 = vld [vmem:[#allocation10 + $0x100] sm:$0xff]
    %v1021 = vld [vmem:[#allocation10 + $0x108] sm:$0xff]
    %v1022 = vld [vmem:[#allocation10 + $0x110] sm:$0xff]
    %v1023 = vld [vmem:[#allocation10 + $0x118] sm:$0xff]
    %v1024 = vld [vmem:[#allocation10 + $0x120] sm:$0xff]
    %v1025 = vld [vmem:[#allocation10 + $0x128] sm:$0xff]
    %v1026 = vld [vmem:[#allocation10 + $0x130] sm:$0xff]
    %v1027 = vld [vmem:[#allocation10 + $0x138] sm:$0xff]
    %v1028 = vld [vmem:[#allocation10 + $0x140] sm:$0xff]
    %v1029 = vld [vmem:[#allocation10 + $0x148] sm:$0xff]
    %v1030 = vld [vmem:[#allocation10 + $0x150] sm:$0xff]
    %v1031 = vld [vmem:[#allocation10 + $0x158] sm:$0xff]
    %v1032 = vld [vmem:[#allocation10 + $0x160] sm:$0xff]
    %v1033 = vld [vmem:[#allocation10 + $0x168] sm:$0xff]
    %v1034 = vld [vmem:[#allocation10 + $0x170] sm:$0xff]
    %v1035 = vld [vmem:[#allocation10 + $0x178] sm:$0xff]
    %v1036 = vld [vmem:[#allocation10 + $0x180] sm:$0xff]
    %v1037 = vld [vmem:[#allocation10 + $0x188] sm:$0xff]
    %v1038 = vld [vmem:[#allocation10 + $0x190] sm:$0xff]
    %v1039 = vld [vmem:[#allocation10 + $0x198] sm:$0xff]
    %v1040 = vld [vmem:[#allocation10 + $0x1a0] sm:$0xff]
    %v1041 = vld [vmem:[#allocation10 + $0x1a8] sm:$0xff]
    %v1042 = vld [vmem:[#allocation10 + $0x1b0] sm:$0xff]
    %v1043 = vld [vmem:[#allocation10 + $0x1b8] sm:$0xff]
    %v1044 = vld [vmem:[#allocation10 + $0x1c0] sm:$0xff]
    %v1045 = vld [vmem:[#allocation10 + $0x1c8] sm:$0xff]
    %v1046 = vld [vmem:[#allocation10 + $0x1d0] sm:$0xff]
    %v1047 = vld [vmem:[#allocation10 + $0x1d8] sm:$0xff]
    %v1048 = vld [vmem:[#allocation10 + $0x1e0] sm:$0xff]
    %v1049 = vld [vmem:[#allocation10 + $0x1e8] sm:$0xff]
    %v1050 = vld [vmem:[#allocation10 + $0x1f0] sm:$0xff]
    %v1051 = vld [vmem:[#allocation10 + $0x1f8] sm:$0xff]
    %1052 = vmatpush.msra.mxu0 %v1048
    %1053 = vmatpush.msra.mxu0 %v1044
    %1054 = vmatpush.msra.mxu0 %v1040
    %1055 = vmatpush.msra.mxu0 %v1036
    %1056 = vmatpush.msra.mxu0 %v1032
    %1057 = vmatpush.msra.mxu0 %v1028
    %1058 = vmatpush.msra.mxu0 %v1024
    %1059 = vmatpush.msra.mxu0 %v1020
    %1060 = vmatpush.msra.mxu0 %v1016
    %1061 = vmatpush.msra.mxu0 %v1012
    %1062 = vmatpush.msra.mxu0 %v1008
    %1063 = vmatpush.msra.mxu0 %v1004
    %1064 = vmatpush.msra.mxu0 %v1000
    %1065 = vmatpush.msra.mxu0 %v996
    %1066 = vmatpush.msra.mxu0 %v992
    %1067 = vmatpush.msra.mxu0 %v988
    %1068 = vmatmul.f32.gmra.mxu0 %v982
    %v1069 = vpop.f32.mrf.mxu0
    %v1070 = vadd.f32 0.0, %v1069
    %1071 = vdwg.mxu0
    %1072 = vmatpush.msra.mxu0 %v1049
    %1073 = vmatpush.msra.mxu0 %v1045
    %1074 = vmatpush.msra.mxu0 %v1041
    %1075 = vmatpush.msra.mxu0 %v1037
    %1076 = vmatpush.msra.mxu0 %v1033
    %1077 = vmatpush.msra.mxu0 %v1029
    %1078 = vmatpush.msra.mxu0 %v1025
    %1079 = vmatpush.msra.mxu0 %v1021
    %1080 = vmatpush.msra.mxu0 %v1017
    %1081 = vmatpush.msra.mxu0 %v1013
    %1082 = vmatpush.msra.mxu0 %v1009
    %1083 = vmatpush.msra.mxu0 %v1005
    %1084 = vmatpush.msra.mxu0 %v1001
    %1085 = vmatpush.msra.mxu0 %v997
    %1086 = vmatpush.msra.mxu0 %v993
    %1087 = vmatpush.msra.mxu0 %v989
    %1088 = vmatmul.f32.gmra.mxu0 %v982
    %v1089 = vpop.f32.mrf.mxu0
    %v1090 = vadd.f32 0.0, %v1089
    %1091 = vdwg.mxu0
    %1092 = vmatpush.msra.mxu0 %v1050
    %1093 = vmatpush.msra.mxu0 %v1046
    %1094 = vmatpush.msra.mxu0 %v1042
    %1095 = vmatpush.msra.mxu0 %v1038
    %1096 = vmatpush.msra.mxu0 %v1034
    %1097 = vmatpush.msra.mxu0 %v1030
    %1098 = vmatpush.msra.mxu0 %v1026
    %1099 = vmatpush.msra.mxu0 %v1022
    %1100 = vmatpush.msra.mxu0 %v1018
    %1101 = vmatpush.msra.mxu0 %v1014
    %1102 = vmatpush.msra.mxu0 %v1010
    %1103 = vmatpush.msra.mxu0 %v1006
    %1104 = vmatpush.msra.mxu0 %v1002
    %1105 = vmatpush.msra.mxu0 %v998
    %1106 = vmatpush.msra.mxu0 %v994
    %1107 = vmatpush.msra.mxu0 %v990
    %1108 = vmatmul.f32.gmra.mxu0 %v982
    %v1109 = vpop.f32.mrf.mxu0
    %v1110 = vadd.f32 0.0, %v1109
    %1111 = vdwg.mxu0
    %1112 = vmatpush.msra.mxu0 %v1051
    %1113 = vmatpush.msra.mxu0 %v1047
    %1114 = vmatpush.msra.mxu0 %v1043
    %1115 = vmatpush.msra.mxu0 %v1039
    %1116 = vmatpush.msra.mxu0 %v1035
    %1117 = vmatpush.msra.mxu0 %v1031
    %1118 = vmatpush.msra.mxu0 %v1027
    %1119 = vmatpush.msra.mxu0 %v1023
    %1120 = vmatpush.msra.mxu0 %v1019
    %1121 = vmatpush.msra.mxu0 %v1015
    %1122 = vmatpush.msra.mxu0 %v1011
    %1123 = vmatpush.msra.mxu0 %v1007
    %1124 = vmatpush.msra.mxu0 %v1003
    %1125 = vmatpush.msra.mxu0 %v999
    %1126 = vmatpush.msra.mxu0 %v995
    %1127 = vmatpush.msra.mxu0 %v991
    %1128 = vmatmul.f32.gmra.mxu0 %v982
    %v1129 = vpop.f32.mrf.mxu0
    %v1130 = vadd.f32 0.0, %v1129
    %1131 = vdwg.mxu0
    %v1132 = vadd.f32 %v984, %v1070
    %v1133 = vadd.f32 %v985, %v1090
    %v1134 = vadd.f32 %v986, %v1110
    %v1135 = vadd.f32 %v987, %v1130
    %v1136 = vxor.u32 %v1132, 2147483648
    %v1137 = vmul.f32 %v1136, 1.442695
    %v1138 = vpow.pop %v1137
    %v1139 = vadd.f32 %v1138, 1.0
    %v1140 = vrcp.pop %v1139
    %v1141 = vmul.f32 %v1139, %v1140
    %v1142 = vsub.f32 1.0, %v1141
    %v1143 = vmul.f32 %v1140, %v1142
    %v1144 = vadd.f32 %v1140, %v1143
    %vm1145 = vweird.f32 %v1139
    %vm1146 = vweird.f32 %v1140
    %vm1147 = vmor %vm1145, %vm1146
    %v1148 = vsel %vm1147, %v1140, %v1144
    %v1149 = vand.u32 2147483647, %v1139
    %vm1150 = vcmp.eq.f32.partialorder %v1149, 8.507059e+37
    %v1151 = vand.u32 %v1139, 2147483648
    %v1152 = vor.u32 1.1754944e-38, %v1151
    %v1153 = vsel %vm1150, %v1152, %v1148
    %v1154 = vmul.f32 1.0, %v1153
    %v1155 = vxor.u32 %v1133, 2147483648
    %v1156 = vmul.f32 %v1155, 1.442695
    %v1157 = vpow.pop %v1156
    %v1158 = vadd.f32 %v1157, 1.0
    %v1159 = vrcp.pop %v1158
    %v1160 = vmul.f32 %v1158, %v1159
    %v1161 = vsub.f32 1.0, %v1160
    %v1162 = vmul.f32 %v1159, %v1161
    %v1163 = vadd.f32 %v1159, %v1162
    %vm1164 = vweird.f32 %v1158
    %vm1165 = vweird.f32 %v1159
    %vm1166 = vmor %vm1164, %vm1165
    %v1167 = vsel %vm1166, %v1159, %v1163
    %v1168 = vand.u32 2147483647, %v1158
    %vm1169 = vcmp.eq.f32.partialorder %v1168, 8.507059e+37
    %v1170 = vand.u32 %v1158, 2147483648
    %v1171 = vor.u32 1.1754944e-38, %v1170
    %v1172 = vsel %vm1169, %v1171, %v1167
    %v1173 = vmul.f32 1.0, %v1172
    %v1174 = vtanh.pop %v1134
    %v1175 = vxor.u32 %v1135, 2147483648
    %v1176 = vmul.f32 %v1175, 1.442695
    %v1177 = vpow.pop %v1176
    %v1178 = vadd.f32 %v1177, 1.0
    %v1179 = vrcp.pop %v1178
    %v1180 = vmul.f32 %v1178, %v1179
    %v1181 = vsub.f32 1.0, %v1180
    %v1182 = vmul.f32 %v1179, %v1181
    %v1183 = vadd.f32 %v1179, %v1182
    %vm1184 = vweird.f32 %v1178
    %vm1185 = vweird.f32 %v1179
    %vm1186 = vmor %vm1184, %vm1185
    %v1187 = vsel %vm1186, %v1179, %v1183
    %v1188 = vand.u32 2147483647, %v1178
    %vm1189 = vcmp.eq.f32.partialorder %v1188, 8.507059e+37
    %v1190 = vand.u32 %v1178, 2147483648
    %v1191 = vor.u32 1.1754944e-38, %v1190
    %v1192 = vsel %vm1189, %v1191, %v1187
    %v1193 = vmul.f32 1.0, %v1192
    %v1194 = vmul.f32 %v1173, %v983
    %v1195 = vmul.f32 %v1154, %v1174
    %v1196 = vadd.f32 %v1194, %v1195
    %1197 = vst [vmem:[#allocation3] sm:$0xff] %v1196
    %v1198 = vtanh.pop %v1196
    %v1199 = vmul.f32 %v1193, %v1198
    %1200 = vst [vmem:[#allocation2] sm:$0xff] %v1199
    %v1201 = vld [vmem:[#allocation2] sm:$0xff]
    %v1202 = vld [vmem:[#allocation3] sm:$0xff]
    %v1203 = vld [vmem:[#allocation4 + $0x80] sm:$0xff]
    %v1204 = vld [vmem:[#allocation4 + $0x88] sm:$0xff]
    %v1205 = vld [vmem:[#allocation4 + $0x90] sm:$0xff]
    %v1206 = vld [vmem:[#allocation4 + $0x98] sm:$0xff]
    %v1207 = vld [vmem:[#allocation10] sm:$0xff]
    %v1208 = vld [vmem:[#allocation10 + $0x8] sm:$0xff]
    %v1209 = vld [vmem:[#allocation10 + $0x10] sm:$0xff]
    %v1210 = vld [vmem:[#allocation10 + $0x18] sm:$0xff]
    %v1211 = vld [vmem:[#allocation10 + $0x20] sm:$0xff]
    %v1212 = vld [vmem:[#allocation10 + $0x28] sm:$0xff]
    %v1213 = vld [vmem:[#allocation10 + $0x30] sm:$0xff]
    %v1214 = vld [vmem:[#allocation10 + $0x38] sm:$0xff]
    %v1215 = vld [vmem:[#allocation10 + $0x40] sm:$0xff]
    %v1216 = vld [vmem:[#allocation10 + $0x48] sm:$0xff]
    %v1217 = vld [vmem:[#allocation10 + $0x50] sm:$0xff]
    %v1218 = vld [vmem:[#allocation10 + $0x58] sm:$0xff]
    %v1219 = vld [vmem:[#allocation10 + $0x60] sm:$0xff]
    %v1220 = vld [vmem:[#allocation10 + $0x68] sm:$0xff]
    %v1221 = vld [vmem:[#allocation10 + $0x70] sm:$0xff]
    %v1222 = vld [vmem:[#allocation10 + $0x78] sm:$0xff]
    %v1223 = vld [vmem:[#allocation10 + $0x80] sm:$0xff]
    %v1224 = vld [vmem:[#allocation10 + $0x88] sm:$0xff]
    %v1225 = vld [vmem:[#allocation10 + $0x90] sm:$0xff]
    %v1226 = vld [vmem:[#allocation10 + $0x98] sm:$0xff]
    %v1227 = vld [vmem:[#allocation10 + $0xa0] sm:$0xff]
    %v1228 = vld [vmem:[#allocation10 + $0xa8] sm:$0xff]
    %v1229 = vld [vmem:[#allocation10 + $0xb0] sm:$0xff]
    %v1230 = vld [vmem:[#allocation10 + $0xb8] sm:$0xff]
    %v1231 = vld [vmem:[#allocation10 + $0xc0] sm:$0xff]
    %v1232 = vld [vmem:[#allocation10 + $0xc8] sm:$0xff]
    %v1233 = vld [vmem:[#allocation10 + $0xd0] sm:$0xff]
    %v1234 = vld [vmem:[#allocation10 + $0xd8] sm:$0xff]
    %v1235 = vld [vmem:[#allocation10 + $0xe0] sm:$0xff]
    %v1236 = vld [vmem:[#allocation10 + $0xe8] sm:$0xff]
    %v1237 = vld [vmem:[#allocation10 + $0xf0] sm:$0xff]
    %v1238 = vld [vmem:[#allocation10 + $0xf8] sm:$0xff]
    %v1239 = vld [vmem:[#allocation10 + $0x100] sm:$0xff]
    %v1240 = vld [vmem:[#allocation10 + $0x108] sm:$0xff]
    %v1241 = vld [vmem:[#allocation10 + $0x110] sm:$0xff]
    %v1242 = vld [vmem:[#allocation10 + $0x118] sm:$0xff]
    %v1243 = vld [vmem:[#allocation10 + $0x120] sm:$0xff]
    %v1244 = vld [vmem:[#allocation10 + $0x128] sm:$0xff]
    %v1245 = vld [vmem:[#allocation10 + $0x130] sm:$0xff]
    %v1246 = vld [vmem:[#allocation10 + $0x138] sm:$0xff]
    %v1247 = vld [vmem:[#allocation10 + $0x140] sm:$0xff]
    %v1248 = vld [vmem:[#allocation10 + $0x148] sm:$0xff]
    %v1249 = vld [vmem:[#allocation10 + $0x150] sm:$0xff]
    %v1250 = vld [vmem:[#allocation10 + $0x158] sm:$0xff]
    %v1251 = vld [vmem:[#allocation10 + $0x160] sm:$0xff]
    %v1252 = vld [vmem:[#allocation10 + $0x168] sm:$0xff]
    %v1253 = vld [vmem:[#allocation10 + $0x170] sm:$0xff]
    %v1254 = vld [vmem:[#allocation10 + $0x178] sm:$0xff]
    %v1255 = vld [vmem:[#allocation10 + $0x180] sm:$0xff]
    %v1256 = vld [vmem:[#allocation10 + $0x188] sm:$0xff]
    %v1257 = vld [vmem:[#allocation10 + $0x190] sm:$0xff]
    %v1258 = vld [vmem:[#allocation10 + $0x198] sm:$0xff]
    %v1259 = vld [vmem:[#allocation10 + $0x1a0] sm:$0xff]
    %v1260 = vld [vmem:[#allocation10 + $0x1a8] sm:$0xff]
    %v1261 = vld [vmem:[#allocation10 + $0x1b0] sm:$0xff]
    %v1262 = vld [vmem:[#allocation10 + $0x1b8] sm:$0xff]
    %v1263 = vld [vmem:[#allocation10 + $0x1c0] sm:$0xff]
    %v1264 = vld [vmem:[#allocation10 + $0x1c8] sm:$0xff]
    %v1265 = vld [vmem:[#allocation10 + $0x1d0] sm:$0xff]
    %v1266 = vld [vmem:[#allocation10 + $0x1d8] sm:$0xff]
    %v1267 = vld [vmem:[#allocation10 + $0x1e0] sm:$0xff]
    %v1268 = vld [vmem:[#allocation10 + $0x1e8] sm:$0xff]
    %v1269 = vld [vmem:[#allocation10 + $0x1f0] sm:$0xff]
    %v1270 = vld [vmem:[#allocation10 + $0x1f8] sm:$0xff]
    %1271 = vmatpush.msra.mxu0 %v1267
    %1272 = vmatpush.msra.mxu0 %v1263
    %1273 = vmatpush.msra.mxu0 %v1259
    %1274 = vmatpush.msra.mxu0 %v1255
    %1275 = vmatpush.msra.mxu0 %v1251
    %1276 = vmatpush.msra.mxu0 %v1247
    %1277 = vmatpush.msra.mxu0 %v1243
    %1278 = vmatpush.msra.mxu0 %v1239
    %1279 = vmatpush.msra.mxu0 %v1235
    %1280 = vmatpush.msra.mxu0 %v1231
    %1281 = vmatpush.msra.mxu0 %v1227
    %1282 = vmatpush.msra.mxu0 %v1223
    %1283 = vmatpush.msra.mxu0 %v1219
    %1284 = vmatpush.msra.mxu0 %v1215
    %1285 = vmatpush.msra.mxu0 %v1211
    %1286 = vmatpush.msra.mxu0 %v1207
    %1287 = vmatmul.f32.gmra.mxu0 %v1201
    %v1288 = vpop.f32.mrf.mxu0
    %v1289 = vadd.f32 0.0, %v1288
    %1290 = vdwg.mxu0
    %1291 = vmatpush.msra.mxu0 %v1268
    %1292 = vmatpush.msra.mxu0 %v1264
    %1293 = vmatpush.msra.mxu0 %v1260
    %1294 = vmatpush.msra.mxu0 %v1256
    %1295 = vmatpush.msra.mxu0 %v1252
    %1296 = vmatpush.msra.mxu0 %v1248
    %1297 = vmatpush.msra.mxu0 %v1244
    %1298 = vmatpush.msra.mxu0 %v1240
    %1299 = vmatpush.msra.mxu0 %v1236
    %1300 = vmatpush.msra.mxu0 %v1232
    %1301 = vmatpush.msra.mxu0 %v1228
    %1302 = vmatpush.msra.mxu0 %v1224
    %1303 = vmatpush.msra.mxu0 %v1220
    %1304 = vmatpush.msra.mxu0 %v1216
    %1305 = vmatpush.msra.mxu0 %v1212
    %1306 = vmatpush.msra.mxu0 %v1208
    %1307 = vmatmul.f32.gmra.mxu0 %v1201
    %v1308 = vpop.f32.mrf.mxu0
    %v1309 = vadd.f32 0.0, %v1308
    %1310 = vdwg.mxu0
    %1311 = vmatpush.msra.mxu0 %v1269
    %1312 = vmatpush.msra.mxu0 %v1265
    %1313 = vmatpush.msra.mxu0 %v1261
    %1314 = vmatpush.msra.mxu0 %v1257
    %1315 = vmatpush.msra.mxu0 %v1253
    %1316 = vmatpush.msra.mxu0 %v1249
    %1317 = vmatpush.msra.mxu0 %v1245
    %1318 = vmatpush.msra.mxu0 %v1241
    %1319 = vmatpush.msra.mxu0 %v1237
    %1320 = vmatpush.msra.mxu0 %v1233
    %1321 = vmatpush.msra.mxu0 %v1229
    %1322 = vmatpush.msra.mxu0 %v1225
    %1323 = vmatpush.msra.mxu0 %v1221
    %1324 = vmatpush.msra.mxu0 %v1217
    %1325 = vmatpush.msra.mxu0 %v1213
    %1326 = vmatpush.msra.mxu0 %v1209
    %1327 = vmatmul.f32.gmra.mxu0 %v1201
    %v1328 = vpop.f32.mrf.mxu0
    %v1329 = vadd.f32 0.0, %v1328
    %1330 = vdwg.mxu0
    %1331 = vmatpush.msra.mxu0 %v1270
    %1332 = vmatpush.msra.mxu0 %v1266
    %1333 = vmatpush.msra.mxu0 %v1262
    %1334 = vmatpush.msra.mxu0 %v1258
    %1335 = vmatpush.msra.mxu0 %v1254
    %1336 = vmatpush.msra.mxu0 %v1250
    %1337 = vmatpush.msra.mxu0 %v1246
    %1338 = vmatpush.msra.mxu0 %v1242
    %1339 = vmatpush.msra.mxu0 %v1238
    %1340 = vmatpush.msra.mxu0 %v1234
    %1341 = vmatpush.msra.mxu0 %v1230
    %1342 = vmatpush.msra.mxu0 %v1226
    %1343 = vmatpush.msra.mxu0 %v1222
    %1344 = vmatpush.msra.mxu0 %v1218
    %1345 = vmatpush.msra.mxu0 %v1214
    %1346 = vmatpush.msra.mxu0 %v1210
    %1347 = vmatmul.f32.gmra.mxu0 %v1201
    %v1348 = vpop.f32.mrf.mxu0
    %v1349 = vadd.f32 0.0, %v1348
    %1350 = vdwg.mxu0
    %v1351 = vadd.f32 %v1203, %v1289
    %v1352 = vadd.f32 %v1204, %v1309
    %v1353 = vadd.f32 %v1205, %v1329
    %v1354 = vadd.f32 %v1206, %v1349
    %v1355 = vxor.u32 %v1351, 2147483648
    %v1356 = vmul.f32 %v1355, 1.442695
    %v1357 = vpow.pop %v1356
    %v1358 = vadd.f32 %v1357, 1.0
    %v1359 = vrcp.pop %v1358
    %v1360 = vmul.f32 %v1358, %v1359
    %v1361 = vsub.f32 1.0, %v1360
    %v1362 = vmul.f32 %v1359, %v1361
    %v1363 = vadd.f32 %v1359, %v1362
    %vm1364 = vweird.f32 %v1358
    %vm1365 = vweird.f32 %v1359
    %vm1366 = vmor %vm1364, %vm1365
    %v1367 = vsel %vm1366, %v1359, %v1363
    %v1368 = vand.u32 2147483647, %v1358
    %vm1369 = vcmp.eq.f32.partialorder %v1368, 8.507059e+37
    %v1370 = vand.u32 %v1358, 2147483648
    %v1371 = vor.u32 1.1754944e-38, %v1370
    %v1372 = vsel %vm1369, %v1371, %v1367
    %v1373 = vmul.f32 1.0, %v1372
    %v1374 = vxor.u32 %v1352, 2147483648
    %v1375 = vmul.f32 %v1374, 1.442695
    %v1376 = vpow.pop %v1375
    %v1377 = vadd.f32 %v1376, 1.0
    %v1378 = vrcp.pop %v1377
    %v1379 = vmul.f32 %v1377, %v1378
    %v1380 = vsub.f32 1.0, %v1379
    %v1381 = vmul.f32 %v1378, %v1380
    %v1382 = vadd.f32 %v1378, %v1381
    %vm1383 = vweird.f32 %v1377
    %vm1384 = vweird.f32 %v1378
    %vm1385 = vmor %vm1383, %vm1384
    %v1386 = vsel %vm1385, %v1378, %v1382
    %v1387 = vand.u32 2147483647, %v1377
    %vm1388 = vcmp.eq.f32.partialorder %v1387, 8.507059e+37
    %v1389 = vand.u32 %v1377, 2147483648
    %v1390 = vor.u32 1.1754944e-38, %v1389
    %v1391 = vsel %vm1388, %v1390, %v1386
    %v1392 = vmul.f32 1.0, %v1391
    %v1393 = vtanh.pop %v1353
    %v1394 = vxor.u32 %v1354, 2147483648
    %v1395 = vmul.f32 %v1394, 1.442695
    %v1396 = vpow.pop %v1395
    %v1397 = vadd.f32 %v1396, 1.0
    %v1398 = vrcp.pop %v1397
    %v1399 = vmul.f32 %v1397, %v1398
    %v1400 = vsub.f32 1.0, %v1399
    %v1401 = vmul.f32 %v1398, %v1400
    %v1402 = vadd.f32 %v1398, %v1401
    %vm1403 = vweird.f32 %v1397
    %vm1404 = vweird.f32 %v1398
    %vm1405 = vmor %vm1403, %vm1404
    %v1406 = vsel %vm1405, %v1398, %v1402
    %v1407 = vand.u32 2147483647, %v1397
    %vm1408 = vcmp.eq.f32.partialorder %v1407, 8.507059e+37
    %v1409 = vand.u32 %v1397, 2147483648
    %v1410 = vor.u32 1.1754944e-38, %v1409
    %v1411 = vsel %vm1408, %v1410, %v1406
    %v1412 = vmul.f32 1.0, %v1411
    %v1413 = vmul.f32 %v1392, %v1202
    %v1414 = vmul.f32 %v1373, %v1393
    %v1415 = vadd.f32 %v1413, %v1414
    %1416 = vst [vmem:[#allocation3] sm:$0xff] %v1415
    %v1417 = vtanh.pop %v1415
    %v1418 = vmul.f32 %v1412, %v1417
    %1419 = vst [vmem:[#allocation2] sm:$0xff] %v1418
    %v1420 = vld [vmem:[#allocation2] sm:$0xff]
    %v1421 = vld [vmem:[#allocation3] sm:$0xff]
    %v1422 = vld [vmem:[#allocation4 + $0xa0] sm:$0xff]
    %v1423 = vld [vmem:[#allocation4 + $0xa8] sm:$0xff]
    %v1424 = vld [vmem:[#allocation4 + $0xb0] sm:$0xff]
    %v1425 = vld [vmem:[#allocation4 + $0xb8] sm:$0xff]
    %v1426 = vld [vmem:[#allocation10] sm:$0xff]
    %v1427 = vld [vmem:[#allocation10 + $0x8] sm:$0xff]
    %v1428 = vld [vmem:[#allocation10 + $0x10] sm:$0xff]
    %v1429 = vld [vmem:[#allocation10 + $0x18] sm:$0xff]
    %v1430 = vld [vmem:[#allocation10 + $0x20] sm:$0xff]
    %v1431 = vld [vmem:[#allocation10 + $0x28] sm:$0xff]
    %v1432 = vld [vmem:[#allocation10 + $0x30] sm:$0xff]
    %v1433 = vld [vmem:[#allocation10 + $0x38] sm:$0xff]
    %v1434 = vld [vmem:[#allocation10 + $0x40] sm:$0xff]
    %v1435 = vld [vmem:[#allocation10 + $0x48] sm:$0xff]
    %v1436 = vld [vmem:[#allocation10 + $0x50] sm:$0xff]
    %v1437 = vld [vmem:[#allocation10 + $0x58] sm:$0xff]
    %v1438 = vld [vmem:[#allocation10 + $0x60] sm:$0xff]
    %v1439 = vld [vmem:[#allocation10 + $0x68] sm:$0xff]
    %v1440 = vld [vmem:[#allocation10 + $0x70] sm:$0xff]
    %v1441 = vld [vmem:[#allocation10 + $0x78] sm:$0xff]
    %v1442 = vld [vmem:[#allocation10 + $0x80] sm:$0xff]
    %v1443 = vld [vmem:[#allocation10 + $0x88] sm:$0xff]
    %v1444 = vld [vmem:[#allocation10 + $0x90] sm:$0xff]
    %v1445 = vld [vmem:[#allocation10 + $0x98] sm:$0xff]
    %v1446 = vld [vmem:[#allocation10 + $0xa0] sm:$0xff]
    %v1447 = vld [vmem:[#allocation10 + $0xa8] sm:$0xff]
    %v1448 = vld [vmem:[#allocation10 + $0xb0] sm:$0xff]
    %v1449 = vld [vmem:[#allocation10 + $0xb8] sm:$0xff]
    %v1450 = vld [vmem:[#allocation10 + $0xc0] sm:$0xff]
    %v1451 = vld [vmem:[#allocation10 + $0xc8] sm:$0xff]
    %v1452 = vld [vmem:[#allocation10 + $0xd0] sm:$0xff]
    %v1453 = vld [vmem:[#allocation10 + $0xd8] sm:$0xff]
    %v1454 = vld [vmem:[#allocation10 + $0xe0] sm:$0xff]
    %v1455 = vld [vmem:[#allocation10 + $0xe8] sm:$0xff]
    %v1456 = vld [vmem:[#allocation10 + $0xf0] sm:$0xff]
    %v1457 = vld [vmem:[#allocation10 + $0xf8] sm:$0xff]
    %v1458 = vld [vmem:[#allocation10 + $0x100] sm:$0xff]
    %v1459 = vld [vmem:[#allocation10 + $0x108] sm:$0xff]
    %v1460 = vld [vmem:[#allocation10 + $0x110] sm:$0xff]
    %v1461 = vld [vmem:[#allocation10 + $0x118] sm:$0xff]
    %v1462 = vld [vmem:[#allocation10 + $0x120] sm:$0xff]
    %v1463 = vld [vmem:[#allocation10 + $0x128] sm:$0xff]
    %v1464 = vld [vmem:[#allocation10 + $0x130] sm:$0xff]
    %v1465 = vld [vmem:[#allocation10 + $0x138] sm:$0xff]
    %v1466 = vld [vmem:[#allocation10 + $0x140] sm:$0xff]
    %v1467 = vld [vmem:[#allocation10 + $0x148] sm:$0xff]
    %v1468 = vld [vmem:[#allocation10 + $0x150] sm:$0xff]
    %v1469 = vld [vmem:[#allocation10 + $0x158] sm:$0xff]
    %v1470 = vld [vmem:[#allocation10 + $0x160] sm:$0xff]
    %v1471 = vld [vmem:[#allocation10 + $0x168] sm:$0xff]
    %v1472 = vld [vmem:[#allocation10 + $0x170] sm:$0xff]
    %v1473 = vld [vmem:[#allocation10 + $0x178] sm:$0xff]
    %v1474 = vld [vmem:[#allocation10 + $0x180] sm:$0xff]
    %v1475 = vld [vmem:[#allocation10 + $0x188] sm:$0xff]
    %v1476 = vld [vmem:[#allocation10 + $0x190] sm:$0xff]
    %v1477 = vld [vmem:[#allocation10 + $0x198] sm:$0xff]
    %v1478 = vld [vmem:[#allocation10 + $0x1a0] sm:$0xff]
    %v1479 = vld [vmem:[#allocation10 + $0x1a8] sm:$0xff]
    %v1480 = vld [vmem:[#allocation10 + $0x1b0] sm:$0xff]
    %v1481 = vld [vmem:[#allocation10 + $0x1b8] sm:$0xff]
    %v1482 = vld [vmem:[#allocation10 + $0x1c0] sm:$0xff]
    %v1483 = vld [vmem:[#allocation10 + $0x1c8] sm:$0xff]
    %v1484 = vld [vmem:[#allocation10 + $0x1d0] sm:$0xff]
    %v1485 = vld [vmem:[#allocation10 + $0x1d8] sm:$0xff]
    %v1486 = vld [vmem:[#allocation10 + $0x1e0] sm:$0xff]
    %v1487 = vld [vmem:[#allocation10 + $0x1e8] sm:$0xff]
    %v1488 = vld [vmem:[#allocation10 + $0x1f0] sm:$0xff]
    %v1489 = vld [vmem:[#allocation10 + $0x1f8] sm:$0xff]
    %1490 = vmatpush.msra.mxu0 %v1486
    %1491 = vmatpush.msra.mxu0 %v1482
    %1492 = vmatpush.msra.mxu0 %v1478
    %1493 = vmatpush.msra.mxu0 %v1474
    %1494 = vmatpush.msra.mxu0 %v1470
    %1495 = vmatpush.msra.mxu0 %v1466
    %1496 = vmatpush.msra.mxu0 %v1462
    %1497 = vmatpush.msra.mxu0 %v1458
    %1498 = vmatpush.msra.mxu0 %v1454
    %1499 = vmatpush.msra.mxu0 %v1450
    %1500 = vmatpush.msra.mxu0 %v1446
    %1501 = vmatpush.msra.mxu0 %v1442
    %1502 = vmatpush.msra.mxu0 %v1438
    %1503 = vmatpush.msra.mxu0 %v1434
    %1504 = vmatpush.msra.mxu0 %v1430
    %1505 = vmatpush.msra.mxu0 %v1426
    %1506 = vmatmul.f32.gmra.mxu0 %v1420
    %v1507 = vpop.f32.mrf.mxu0
    %v1508 = vadd.f32 0.0, %v1507
    %1509 = vdwg.mxu0
    %1510 = vmatpush.msra.mxu0 %v1487
    %1511 = vmatpush.msra.mxu0 %v1483
    %1512 = vmatpush.msra.mxu0 %v1479
    %1513 = vmatpush.msra.mxu0 %v1475
    %1514 = vmatpush.msra.mxu0 %v1471
    %1515 = vmatpush.msra.mxu0 %v1467
    %1516 = vmatpush.msra.mxu0 %v1463
    %1517 = vmatpush.msra.mxu0 %v1459
    %1518 = vmatpush.msra.mxu0 %v1455
    %1519 = vmatpush.msra.mxu0 %v1451
    %1520 = vmatpush.msra.mxu0 %v1447
    %1521 = vmatpush.msra.mxu0 %v1443
    %1522 = vmatpush.msra.mxu0 %v1439
    %1523 = vmatpush.msra.mxu0 %v1435
    %1524 = vmatpush.msra.mxu0 %v1431
    %1525 = vmatpush.msra.mxu0 %v1427
    %1526 = vmatmul.f32.gmra.mxu0 %v1420
    %v1527 = vpop.f32.mrf.mxu0
    %v1528 = vadd.f32 0.0, %v1527
    %1529 = vdwg.mxu0
    %1530 = vmatpush.msra.mxu0 %v1488
    %1531 = vmatpush.msra.mxu0 %v1484
    %1532 = vmatpush.msra.mxu0 %v1480
    %1533 = vmatpush.msra.mxu0 %v1476
    %1534 = vmatpush.msra.mxu0 %v1472
    %1535 = vmatpush.msra.mxu0 %v1468
    %1536 = vmatpush.msra.mxu0 %v1464
    %1537 = vmatpush.msra.mxu0 %v1460
    %1538 = vmatpush.msra.mxu0 %v1456
    %1539 = vmatpush.msra.mxu0 %v1452
    %1540 = vmatpush.msra.mxu0 %v1448
    %1541 = vmatpush.msra.mxu0 %v1444
    %1542 = vmatpush.msra.mxu0 %v1440
    %1543 = vmatpush.msra.mxu0 %v1436
    %1544 = vmatpush.msra.mxu0 %v1432
    %1545 = vmatpush.msra.mxu0 %v1428
    %1546 = vmatmul.f32.gmra.mxu0 %v1420
    %v1547 = vpop.f32.mrf.mxu0
    %v1548 = vadd.f32 0.0, %v1547
    %1549 = vdwg.mxu0
    %1550 = vmatpush.msra.mxu0 %v1489
    %1551 = vmatpush.msra.mxu0 %v1485
    %1552 = vmatpush.msra.mxu0 %v1481
    %1553 = vmatpush.msra.mxu0 %v1477
    %1554 = vmatpush.msra.mxu0 %v1473
    %1555 = vmatpush.msra.mxu0 %v1469
    %1556 = vmatpush.msra.mxu0 %v1465
    %1557 = vmatpush.msra.mxu0 %v1461
    %1558 = vmatpush.msra.mxu0 %v1457
    %1559 = vmatpush.msra.mxu0 %v1453
    %1560 = vmatpush.msra.mxu0 %v1449
    %1561 = vmatpush.msra.mxu0 %v1445
    %1562 = vmatpush.msra.mxu0 %v1441
    %1563 = vmatpush.msra.mxu0 %v1437
    %1564 = vmatpush.msra.mxu0 %v1433
    %1565 = vmatpush.msra.mxu0 %v1429
    %1566 = vmatmul.f32.gmra.mxu0 %v1420
    %v1567 = vpop.f32.mrf.mxu0
    %v1568 = vadd.f32 0.0, %v1567
    %1569 = vdwg.mxu0
    %v1570 = vadd.f32 %v1422, %v1508
    %v1571 = vadd.f32 %v1423, %v1528
    %v1572 = vadd.f32 %v1424, %v1548
    %v1573 = vadd.f32 %v1425, %v1568
    %v1574 = vxor.u32 %v1570, 2147483648
    %v1575 = vmul.f32 %v1574, 1.442695
    %v1576 = vpow.pop %v1575
    %v1577 = vadd.f32 %v1576, 1.0
    %v1578 = vrcp.pop %v1577
    %v1579 = vmul.f32 %v1577, %v1578
    %v1580 = vsub.f32 1.0, %v1579
    %v1581 = vmul.f32 %v1578, %v1580
    %v1582 = vadd.f32 %v1578, %v1581
    %vm1583 = vweird.f32 %v1577
    %vm1584 = vweird.f32 %v1578
    %vm1585 = vmor %vm1583, %vm1584
    %v1586 = vsel %vm1585, %v1578, %v1582
    %v1587 = vand.u32 2147483647, %v1577
    %vm1588 = vcmp.eq.f32.partialorder %v1587, 8.507059e+37
    %v1589 = vand.u32 %v1577, 2147483648
    %v1590 = vor.u32 1.1754944e-38, %v1589
    %v1591 = vsel %vm1588, %v1590, %v1586
    %v1592 = vmul.f32 1.0, %v1591
    %v1593 = vxor.u32 %v1571, 2147483648
    %v1594 = vmul.f32 %v1593, 1.442695
    %v1595 = vpow.pop %v1594
    %v1596 = vadd.f32 %v1595, 1.0
    %v1597 = vrcp.pop %v1596
    %v1598 = vmul.f32 %v1596, %v1597
    %v1599 = vsub.f32 1.0, %v1598
    %v1600 = vmul.f32 %v1597, %v1599
    %v1601 = vadd.f32 %v1597, %v1600
    %vm1602 = vweird.f32 %v1596
    %vm1603 = vweird.f32 %v1597
    %vm1604 = vmor %vm1602, %vm1603
    %v1605 = vsel %vm1604, %v1597, %v1601
    %v1606 = vand.u32 2147483647, %v1596
    %vm1607 = vcmp.eq.f32.partialorder %v1606, 8.507059e+37
    %v1608 = vand.u32 %v1596, 2147483648
    %v1609 = vor.u32 1.1754944e-38, %v1608
    %v1610 = vsel %vm1607, %v1609, %v1605
    %v1611 = vmul.f32 1.0, %v1610
    %v1612 = vtanh.pop %v1572
    %v1613 = vxor.u32 %v1573, 2147483648
    %v1614 = vmul.f32 %v1613, 1.442695
    %v1615 = vpow.pop %v1614
    %v1616 = vadd.f32 %v1615, 1.0
    %v1617 = vrcp.pop %v1616
    %v1618 = vmul.f32 %v1616, %v1617
    %v1619 = vsub.f32 1.0, %v1618
    %v1620 = vmul.f32 %v1617, %v1619
    %v1621 = vadd.f32 %v1617, %v1620
    %vm1622 = vweird.f32 %v1616
    %vm1623 = vweird.f32 %v1617
    %vm1624 = vmor %vm1622, %vm1623
    %v1625 = vsel %vm1624, %v1617, %v1621
    %v1626 = vand.u32 2147483647, %v1616
    %vm1627 = vcmp.eq.f32.partialorder %v1626, 8.507059e+37
    %v1628 = vand.u32 %v1616, 2147483648
    %v1629 = vor.u32 1.1754944e-38, %v1628
    %v1630 = vsel %vm1627, %v1629, %v1625
    %v1631 = vmul.f32 1.0, %v1630
    %v1632 = vmul.f32 %v1611, %v1421
    %v1633 = vmul.f32 %v1592, %v1612
    %v1634 = vadd.f32 %v1632, %v1633
    %1635 = vst [vmem:[#allocation3] sm:$0xff] %v1634
    %v1636 = vtanh.pop %v1634
    %v1637 = vmul.f32 %v1631, %v1636
    %1638 = vst [vmem:[#allocation2] sm:$0xff] %v1637
    %v1639 = vld [vmem:[#allocation2] sm:$0xff]
    %v1640 = vld [vmem:[#allocation3] sm:$0xff]
    %v1641 = vld [vmem:[#allocation4 + $0xc0] sm:$0xff]
    %v1642 = vld [vmem:[#allocation4 + $0xc8] sm:$0xff]
    %v1643 = vld [vmem:[#allocation4 + $0xd0] sm:$0xff]
    %v1644 = vld [vmem:[#allocation4 + $0xd8] sm:$0xff]
    %v1645 = vld [vmem:[#allocation10] sm:$0xff]
    %v1646 = vld [vmem:[#allocation10 + $0x8] sm:$0xff]
    %v1647 = vld [vmem:[#allocation10 + $0x10] sm:$0xff]
    %v1648 = vld [vmem:[#allocation10 + $0x18] sm:$0xff]
    %v1649 = vld [vmem:[#allocation10 + $0x20] sm:$0xff]
    %v1650 = vld [vmem:[#allocation10 + $0x28] sm:$0xff]
    %v1651 = vld [vmem:[#allocation10 + $0x30] sm:$0xff]
    %v1652 = vld [vmem:[#allocation10 + $0x38] sm:$0xff]
    %v1653 = vld [vmem:[#allocation10 + $0x40] sm:$0xff]
    %v1654 = vld [vmem:[#allocation10 + $0x48] sm:$0xff]
    %v1655 = vld [vmem:[#allocation10 + $0x50] sm:$0xff]
    %v1656 = vld [vmem:[#allocation10 + $0x58] sm:$0xff]
    %v1657 = vld [vmem:[#allocation10 + $0x60] sm:$0xff]
    %v1658 = vld [vmem:[#allocation10 + $0x68] sm:$0xff]
    %v1659 = vld [vmem:[#allocation10 + $0x70] sm:$0xff]
    %v1660 = vld [vmem:[#allocation10 + $0x78] sm:$0xff]
    %v1661 = vld [vmem:[#allocation10 + $0x80] sm:$0xff]
    %v1662 = vld [vmem:[#allocation10 + $0x88] sm:$0xff]
    %v1663 = vld [vmem:[#allocation10 + $0x90] sm:$0xff]
    %v1664 = vld [vmem:[#allocation10 + $0x98] sm:$0xff]
    %v1665 = vld [vmem:[#allocation10 + $0xa0] sm:$0xff]
    %v1666 = vld [vmem:[#allocation10 + $0xa8] sm:$0xff]
    %v1667 = vld [vmem:[#allocation10 + $0xb0] sm:$0xff]
    %v1668 = vld [vmem:[#allocation10 + $0xb8] sm:$0xff]
    %v1669 = vld [vmem:[#allocation10 + $0xc0] sm:$0xff]
    %v1670 = vld [vmem:[#allocation10 + $0xc8] sm:$0xff]
    %v1671 = vld [vmem:[#allocation10 + $0xd0] sm:$0xff]
    %v1672 = vld [vmem:[#allocation10 + $0xd8] sm:$0xff]
    %v1673 = vld [vmem:[#allocation10 + $0xe0] sm:$0xff]
    %v1674 = vld [vmem:[#allocation10 + $0xe8] sm:$0xff]
    %v1675 = vld [vmem:[#allocation10 + $0xf0] sm:$0xff]
    %v1676 = vld [vmem:[#allocation10 + $0xf8] sm:$0xff]
    %v1677 = vld [vmem:[#allocation10 + $0x100] sm:$0xff]
    %v1678 = vld [vmem:[#allocation10 + $0x108] sm:$0xff]
    %v1679 = vld [vmem:[#allocation10 + $0x110] sm:$0xff]
    %v1680 = vld [vmem:[#allocation10 + $0x118] sm:$0xff]
    %v1681 = vld [vmem:[#allocation10 + $0x120] sm:$0xff]
    %v1682 = vld [vmem:[#allocation10 + $0x128] sm:$0xff]
    %v1683 = vld [vmem:[#allocation10 + $0x130] sm:$0xff]
    %v1684 = vld [vmem:[#allocation10 + $0x138] sm:$0xff]
    %v1685 = vld [vmem:[#allocation10 + $0x140] sm:$0xff]
    %v1686 = vld [vmem:[#allocation10 + $0x148] sm:$0xff]
    %v1687 = vld [vmem:[#allocation10 + $0x150] sm:$0xff]
    %v1688 = vld [vmem:[#allocation10 + $0x158] sm:$0xff]
    %v1689 = vld [vmem:[#allocation10 + $0x160] sm:$0xff]
    %v1690 = vld [vmem:[#allocation10 + $0x168] sm:$0xff]
    %v1691 = vld [vmem:[#allocation10 + $0x170] sm:$0xff]
    %v1692 = vld [vmem:[#allocation10 + $0x178] sm:$0xff]
    %v1693 = vld [vmem:[#allocation10 + $0x180] sm:$0xff]
    %v1694 = vld [vmem:[#allocation10 + $0x188] sm:$0xff]
    %v1695 = vld [vmem:[#allocation10 + $0x190] sm:$0xff]
    %v1696 = vld [vmem:[#allocation10 + $0x198] sm:$0xff]
    %v1697 = vld [vmem:[#allocation10 + $0x1a0] sm:$0xff]
    %v1698 = vld [vmem:[#allocation10 + $0x1a8] sm:$0xff]
    %v1699 = vld [vmem:[#allocation10 + $0x1b0] sm:$0xff]
    %v1700 = vld [vmem:[#allocation10 + $0x1b8] sm:$0xff]
    %v1701 = vld [vmem:[#allocation10 + $0x1c0] sm:$0xff]
    %v1702 = vld [vmem:[#allocation10 + $0x1c8] sm:$0xff]
    %v1703 = vld [vmem:[#allocation10 + $0x1d0] sm:$0xff]
    %v1704 = vld [vmem:[#allocation10 + $0x1d8] sm:$0xff]
    %v1705 = vld [vmem:[#allocation10 + $0x1e0] sm:$0xff]
    %v1706 = vld [vmem:[#allocation10 + $0x1e8] sm:$0xff]
    %v1707 = vld [vmem:[#allocation10 + $0x1f0] sm:$0xff]
    %v1708 = vld [vmem:[#allocation10 + $0x1f8] sm:$0xff]
    %1709 = vmatpush.msra.mxu0 %v1705
    %1710 = vmatpush.msra.mxu0 %v1701
    %1711 = vmatpush.msra.mxu0 %v1697
    %1712 = vmatpush.msra.mxu0 %v1693
    %1713 = vmatpush.msra.mxu0 %v1689
    %1714 = vmatpush.msra.mxu0 %v1685
    %1715 = vmatpush.msra.mxu0 %v1681
    %1716 = vmatpush.msra.mxu0 %v1677
    %1717 = vmatpush.msra.mxu0 %v1673
    %1718 = vmatpush.msra.mxu0 %v1669
    %1719 = vmatpush.msra.mxu0 %v1665
    %1720 = vmatpush.msra.mxu0 %v1661
    %1721 = vmatpush.msra.mxu0 %v1657
    %1722 = vmatpush.msra.mxu0 %v1653
    %1723 = vmatpush.msra.mxu0 %v1649
    %1724 = vmatpush.msra.mxu0 %v1645
    %1725 = vmatmul.f32.gmra.mxu0 %v1639
    %v1726 = vpop.f32.mrf.mxu0
    %v1727 = vadd.f32 0.0, %v1726
    %1728 = vdwg.mxu0
    %1729 = vmatpush.msra.mxu0 %v1706
    %1730 = vmatpush.msra.mxu0 %v1702
    %1731 = vmatpush.msra.mxu0 %v1698
    %1732 = vmatpush.msra.mxu0 %v1694
    %1733 = vmatpush.msra.mxu0 %v1690
    %1734 = vmatpush.msra.mxu0 %v1686
    %1735 = vmatpush.msra.mxu0 %v1682
    %1736 = vmatpush.msra.mxu0 %v1678
    %1737 = vmatpush.msra.mxu0 %v1674
    %1738 = vmatpush.msra.mxu0 %v1670
    %1739 = vmatpush.msra.mxu0 %v1666
    %1740 = vmatpush.msra.mxu0 %v1662
    %1741 = vmatpush.msra.mxu0 %v1658
    %1742 = vmatpush.msra.mxu0 %v1654
    %1743 = vmatpush.msra.mxu0 %v1650
    %1744 = vmatpush.msra.mxu0 %v1646
    %1745 = vmatmul.f32.gmra.mxu0 %v1639
    %v1746 = vpop.f32.mrf.mxu0
    %v1747 = vadd.f32 0.0, %v1746
    %1748 = vdwg.mxu0
    %1749 = vmatpush.msra.mxu0 %v1707
    %1750 = vmatpush.msra.mxu0 %v1703
    %1751 = vmatpush.msra.mxu0 %v1699
    %1752 = vmatpush.msra.mxu0 %v1695
    %1753 = vmatpush.msra.mxu0 %v1691
    %1754 = vmatpush.msra.mxu0 %v1687
    %1755 = vmatpush.msra.mxu0 %v1683
    %1756 = vmatpush.msra.mxu0 %v1679
    %1757 = vmatpush.msra.mxu0 %v1675
    %1758 = vmatpush.msra.mxu0 %v1671
    %1759 = vmatpush.msra.mxu0 %v1667
    %1760 = vmatpush.msra.mxu0 %v1663
    %1761 = vmatpush.msra.mxu0 %v1659
    %1762 = vmatpush.msra.mxu0 %v1655
    %1763 = vmatpush.msra.mxu0 %v1651
    %1764 = vmatpush.msra.mxu0 %v1647
    %1765 = vmatmul.f32.gmra.mxu0 %v1639
    %v1766 = vpop.f32.mrf.mxu0
    %v1767 = vadd.f32 0.0, %v1766
    %1768 = vdwg.mxu0
    %1769 = vmatpush.msra.mxu0 %v1708
    %1770 = vmatpush.msra.mxu0 %v1704
    %1771 = vmatpush.msra.mxu0 %v1700
    %1772 = vmatpush.msra.mxu0 %v1696
    %1773 = vmatpush.msra.mxu0 %v1692
    %1774 = vmatpush.msra.mxu0 %v1688
    %1775 = vmatpush.msra.mxu0 %v1684
    %1776 = vmatpush.msra.mxu0 %v1680
    %1777 = vmatpush.msra.mxu0 %v1676
    %1778 = vmatpush.msra.mxu0 %v1672
    %1779 = vmatpush.msra.mxu0 %v1668
    %1780 = vmatpush.msra.mxu0 %v1664
    %1781 = vmatpush.msra.mxu0 %v1660
    %1782 = vmatpush.msra.mxu0 %v1656
    %1783 = vmatpush.msra.mxu0 %v1652
    %1784 = vmatpush.msra.mxu0 %v1648
    %1785 = vmatmul.f32.gmra.mxu0 %v1639
    %v1786 = vpop.f32.mrf.mxu0
    %v1787 = vadd.f32 0.0, %v1786
    %1788 = vdwg.mxu0
    %v1789 = vadd.f32 %v1641, %v1727
    %v1790 = vadd.f32 %v1642, %v1747
    %v1791 = vadd.f32 %v1643, %v1767
    %v1792 = vadd.f32 %v1644, %v1787
    %v1793 = vxor.u32 %v1789, 2147483648
    %v1794 = vmul.f32 %v1793, 1.442695
    %v1795 = vpow.pop %v1794
    %v1796 = vadd.f32 %v1795, 1.0
    %v1797 = vrcp.pop %v1796
    %v1798 = vmul.f32 %v1796, %v1797
    %v1799 = vsub.f32 1.0, %v1798
    %v1800 = vmul.f32 %v1797, %v1799
    %v1801 = vadd.f32 %v1797, %v1800
    %vm1802 = vweird.f32 %v1796
    %vm1803 = vweird.f32 %v1797
    %vm1804 = vmor %vm1802, %vm1803
    %v1805 = vsel %vm1804, %v1797, %v1801
    %v1806 = vand.u32 2147483647, %v1796
    %vm1807 = vcmp.eq.f32.partialorder %v1806, 8.507059e+37
    %v1808 = vand.u32 %v1796, 2147483648
    %v1809 = vor.u32 1.1754944e-38, %v1808
    %v1810 = vsel %vm1807, %v1809, %v1805
    %v1811 = vmul.f32 1.0, %v1810
    %v1812 = vxor.u32 %v1790, 2147483648
    %v1813 = vmul.f32 %v1812, 1.442695
    %v1814 = vpow.pop %v1813
    %v1815 = vadd.f32 %v1814, 1.0
    %v1816 = vrcp.pop %v1815
    %v1817 = vmul.f32 %v1815, %v1816
    %v1818 = vsub.f32 1.0, %v1817
    %v1819 = vmul.f32 %v1816, %v1818
    %v1820 = vadd.f32 %v1816, %v1819
    %vm1821 = vweird.f32 %v1815
    %vm1822 = vweird.f32 %v1816
    %vm1823 = vmor %vm1821, %vm1822
    %v1824 = vsel %vm1823, %v1816, %v1820
    %v1825 = vand.u32 2147483647, %v1815
    %vm1826 = vcmp.eq.f32.partialorder %v1825, 8.507059e+37
    %v1827 = vand.u32 %v1815, 2147483648
    %v1828 = vor.u32 1.1754944e-38, %v1827
    %v1829 = vsel %vm1826, %v1828, %v1824
    %v1830 = vmul.f32 1.0, %v1829
    %v1831 = vtanh.pop %v1791
    %v1832 = vxor.u32 %v1792, 2147483648
    %v1833 = vmul.f32 %v1832, 1.442695
    %v1834 = vpow.pop %v1833
    %v1835 = vadd.f32 %v1834, 1.0
    %v1836 = vrcp.pop %v1835
    %v1837 = vmul.f32 %v1835, %v1836
    %v1838 = vsub.f32 1.0, %v1837
    %v1839 = vmul.f32 %v1836, %v1838
    %v1840 = vadd.f32 %v1836, %v1839
    %vm1841 = vweird.f32 %v1835
    %vm1842 = vweird.f32 %v1836
    %vm1843 = vmor %vm1841, %vm1842
    %v1844 = vsel %vm1843, %v1836, %v1840
    %v1845 = vand.u32 2147483647, %v1835
    %vm1846 = vcmp.eq.f32.partialorder %v1845, 8.507059e+37
    %v1847 = vand.u32 %v1835, 2147483648
    %v1848 = vor.u32 1.1754944e-38, %v1847
    %v1849 = vsel %vm1846, %v1848, %v1844
    %v1850 = vmul.f32 1.0, %v1849
    %v1851 = vmul.f32 %v1830, %v1640
    %v1852 = vmul.f32 %v1811, %v1831
    %v1853 = vadd.f32 %v1851, %v1852
    %1854 = vst [vmem:[#allocation3] sm:$0xff] %v1853
    %v1855 = vtanh.pop %v1853
    %v1856 = vmul.f32 %v1850, %v1855
    %1857 = vst [vmem:[#allocation2] sm:$0xff] %v1856
    %v1858 = vld [vmem:[#allocation2] sm:$0xff]
    %v1859 = vld [vmem:[#allocation3] sm:$0xff]
    %v1860 = vld [vmem:[#allocation4 + $0xe0] sm:$0xff]
    %v1861 = vld [vmem:[#allocation4 + $0xe8] sm:$0xff]
    %v1862 = vld [vmem:[#allocation4 + $0xf0] sm:$0xff]
    %v1863 = vld [vmem:[#allocation4 + $0xf8] sm:$0xff]
    %v1864 = vld [vmem:[#allocation10] sm:$0xff]
    %v1865 = vld [vmem:[#allocation10 + $0x8] sm:$0xff]
    %v1866 = vld [vmem:[#allocation10 + $0x10] sm:$0xff]
    %v1867 = vld [vmem:[#allocation10 + $0x18] sm:$0xff]
    %v1868 = vld [vmem:[#allocation10 + $0x20] sm:$0xff]
    %v1869 = vld [vmem:[#allocation10 + $0x28] sm:$0xff]
    %v1870 = vld [vmem:[#allocation10 + $0x30] sm:$0xff]
    %v1871 = vld [vmem:[#allocation10 + $0x38] sm:$0xff]
    %v1872 = vld [vmem:[#allocation10 + $0x40] sm:$0xff]
    %v1873 = vld [vmem:[#allocation10 + $0x48] sm:$0xff]
    %v1874 = vld [vmem:[#allocation10 + $0x50] sm:$0xff]
    %v1875 = vld [vmem:[#allocation10 + $0x58] sm:$0xff]
    %v1876 = vld [vmem:[#allocation10 + $0x60] sm:$0xff]
    %v1877 = vld [vmem:[#allocation10 + $0x68] sm:$0xff]
    %v1878 = vld [vmem:[#allocation10 + $0x70] sm:$0xff]
    %v1879 = vld [vmem:[#allocation10 + $0x78] sm:$0xff]
    %v1880 = vld [vmem:[#allocation10 + $0x80] sm:$0xff]
    %v1881 = vld [vmem:[#allocation10 + $0x88] sm:$0xff]
    %v1882 = vld [vmem:[#allocation10 + $0x90] sm:$0xff]
    %v1883 = vld [vmem:[#allocation10 + $0x98] sm:$0xff]
    %v1884 = vld [vmem:[#allocation10 + $0xa0] sm:$0xff]
    %v1885 = vld [vmem:[#allocation10 + $0xa8] sm:$0xff]
    %v1886 = vld [vmem:[#allocation10 + $0xb0] sm:$0xff]
    %v1887 = vld [vmem:[#allocation10 + $0xb8] sm:$0xff]
    %v1888 = vld [vmem:[#allocation10 + $0xc0] sm:$0xff]
    %v1889 = vld [vmem:[#allocation10 + $0xc8] sm:$0xff]
    %v1890 = vld [vmem:[#allocation10 + $0xd0] sm:$0xff]
    %v1891 = vld [vmem:[#allocation10 + $0xd8] sm:$0xff]
    %v1892 = vld [vmem:[#allocation10 + $0xe0] sm:$0xff]
    %v1893 = vld [vmem:[#allocation10 + $0xe8] sm:$0xff]
    %v1894 = vld [vmem:[#allocation10 + $0xf0] sm:$0xff]
    %v1895 = vld [vmem:[#allocation10 + $0xf8] sm:$0xff]
    %v1896 = vld [vmem:[#allocation10 + $0x100] sm:$0xff]
    %v1897 = vld [vmem:[#allocation10 + $0x108] sm:$0xff]
    %v1898 = vld [vmem:[#allocation10 + $0x110] sm:$0xff]
    %v1899 = vld [vmem:[#allocation10 + $0x118] sm:$0xff]
    %v1900 = vld [vmem:[#allocation10 + $0x120] sm:$0xff]
    %v1901 = vld [vmem:[#allocation10 + $0x128] sm:$0xff]
    %v1902 = vld [vmem:[#allocation10 + $0x130] sm:$0xff]
    %v1903 = vld [vmem:[#allocation10 + $0x138] sm:$0xff]
    %v1904 = vld [vmem:[#allocation10 + $0x140] sm:$0xff]
    %v1905 = vld [vmem:[#allocation10 + $0x148] sm:$0xff]
    %v1906 = vld [vmem:[#allocation10 + $0x150] sm:$0xff]
    %v1907 = vld [vmem:[#allocation10 + $0x158] sm:$0xff]
    %v1908 = vld [vmem:[#allocation10 + $0x160] sm:$0xff]
    %v1909 = vld [vmem:[#allocation10 + $0x168] sm:$0xff]
    %v1910 = vld [vmem:[#allocation10 + $0x170] sm:$0xff]
    %v1911 = vld [vmem:[#allocation10 + $0x178] sm:$0xff]
    %v1912 = vld [vmem:[#allocation10 + $0x180] sm:$0xff]
    %v1913 = vld [vmem:[#allocation10 + $0x188] sm:$0xff]
    %v1914 = vld [vmem:[#allocation10 + $0x190] sm:$0xff]
    %v1915 = vld [vmem:[#allocation10 + $0x198] sm:$0xff]
    %v1916 = vld [vmem:[#allocation10 + $0x1a0] sm:$0xff]
    %v1917 = vld [vmem:[#allocation10 + $0x1a8] sm:$0xff]
    %v1918 = vld [vmem:[#allocation10 + $0x1b0] sm:$0xff]
    %v1919 = vld [vmem:[#allocation10 + $0x1b8] sm:$0xff]
    %v1920 = vld [vmem:[#allocation10 + $0x1c0] sm:$0xff]
    %v1921 = vld [vmem:[#allocation10 + $0x1c8] sm:$0xff]
    %v1922 = vld [vmem:[#allocation10 + $0x1d0] sm:$0xff]
    %v1923 = vld [vmem:[#allocation10 + $0x1d8] sm:$0xff]
    %v1924 = vld [vmem:[#allocation10 + $0x1e0] sm:$0xff]
    %v1925 = vld [vmem:[#allocation10 + $0x1e8] sm:$0xff]
    %v1926 = vld [vmem:[#allocation10 + $0x1f0] sm:$0xff]
    %v1927 = vld [vmem:[#allocation10 + $0x1f8] sm:$0xff]
    %1928 = vmatpush.msra.mxu0 %v1924
    %1929 = vmatpush.msra.mxu0 %v1920
    %1930 = vmatpush.msra.mxu0 %v1916
    %1931 = vmatpush.msra.mxu0 %v1912
    %1932 = vmatpush.msra.mxu0 %v1908
    %1933 = vmatpush.msra.mxu0 %v1904
    %1934 = vmatpush.msra.mxu0 %v1900
    %1935 = vmatpush.msra.mxu0 %v1896
    %1936 = vmatpush.msra.mxu0 %v1892
    %1937 = vmatpush.msra.mxu0 %v1888
    %1938 = vmatpush.msra.mxu0 %v1884
    %1939 = vmatpush.msra.mxu0 %v1880
    %1940 = vmatpush.msra.mxu0 %v1876
    %1941 = vmatpush.msra.mxu0 %v1872
    %1942 = vmatpush.msra.mxu0 %v1868
    %1943 = vmatpush.msra.mxu0 %v1864
    %1944 = vmatmul.f32.gmra.mxu0 %v1858
    %v1945 = vpop.f32.mrf.mxu0
    %v1946 = vadd.f32 0.0, %v1945
    %1947 = vdwg.mxu0
    %1948 = vmatpush.msra.mxu0 %v1925
    %1949 = vmatpush.msra.mxu0 %v1921
    %1950 = vmatpush.msra.mxu0 %v1917
    %1951 = vmatpush.msra.mxu0 %v1913
    %1952 = vmatpush.msra.mxu0 %v1909
    %1953 = vmatpush.msra.mxu0 %v1905
    %1954 = vmatpush.msra.mxu0 %v1901
    %1955 = vmatpush.msra.mxu0 %v1897
    %1956 = vmatpush.msra.mxu0 %v1893
    %1957 = vmatpush.msra.mxu0 %v1889
    %1958 = vmatpush.msra.mxu0 %v1885
    %1959 = vmatpush.msra.mxu0 %v1881
    %1960 = vmatpush.msra.mxu0 %v1877
    %1961 = vmatpush.msra.mxu0 %v1873
    %1962 = vmatpush.msra.mxu0 %v1869
    %1963 = vmatpush.msra.mxu0 %v1865
    %1964 = vmatmul.f32.gmra.mxu0 %v1858
    %v1965 = vpop.f32.mrf.mxu0
    %v1966 = vadd.f32 0.0, %v1965
    %1967 = vdwg.mxu0
    %1968 = vmatpush.msra.mxu0 %v1926
    %1969 = vmatpush.msra.mxu0 %v1922
    %1970 = vmatpush.msra.mxu0 %v1918
    %1971 = vmatpush.msra.mxu0 %v1914
    %1972 = vmatpush.msra.mxu0 %v1910
    %1973 = vmatpush.msra.mxu0 %v1906
    %1974 = vmatpush.msra.mxu0 %v1902
    %1975 = vmatpush.msra.mxu0 %v1898
    %1976 = vmatpush.msra.mxu0 %v1894
    %1977 = vmatpush.msra.mxu0 %v1890
    %1978 = vmatpush.msra.mxu0 %v1886
    %1979 = vmatpush.msra.mxu0 %v1882
    %1980 = vmatpush.msra.mxu0 %v1878
    %1981 = vmatpush.msra.mxu0 %v1874
    %1982 = vmatpush.msra.mxu0 %v1870
    %1983 = vmatpush.msra.mxu0 %v1866
    %1984 = vmatmul.f32.gmra.mxu0 %v1858
    %v1985 = vpop.f32.mrf.mxu0
    %v1986 = vadd.f32 0.0, %v1985
    %1987 = vdwg.mxu0
    %1988 = vmatpush.msra.mxu0 %v1927
    %1989 = vmatpush.msra.mxu0 %v1923
    %1990 = vmatpush.msra.mxu0 %v1919
    %1991 = vmatpush.msra.mxu0 %v1915
    %1992 = vmatpush.msra.mxu0 %v1911
    %1993 = vmatpush.msra.mxu0 %v1907
    %1994 = vmatpush.msra.mxu0 %v1903
    %1995 = vmatpush.msra.mxu0 %v1899
    %1996 = vmatpush.msra.mxu0 %v1895
    %1997 = vmatpush.msra.mxu0 %v1891
    %1998 = vmatpush.msra.mxu0 %v1887
    %1999 = vmatpush.msra.mxu0 %v1883
    %2000 = vmatpush.msra.mxu0 %v1879
    %2001 = vmatpush.msra.mxu0 %v1875
    %2002 = vmatpush.msra.mxu0 %v1871
    %2003 = vmatpush.msra.mxu0 %v1867
    %2004 = vmatmul.f32.gmra.mxu0 %v1858
    %v2005 = vpop.f32.mrf.mxu0
    %v2006 = vadd.f32 0.0, %v2005
    %2007 = vdwg.mxu0
    %v2008 = vadd.f32 %v1860, %v1946
    %v2009 = vadd.f32 %v1861, %v1966
    %v2010 = vadd.f32 %v1862, %v1986
    %v2011 = vadd.f32 %v1863, %v2006
    %v2012 = vxor.u32 %v2008, 2147483648
    %v2013 = vmul.f32 %v2012, 1.442695
    %v2014 = vpow.pop %v2013
    %v2015 = vadd.f32 %v2014, 1.0
    %v2016 = vrcp.pop %v2015
    %v2017 = vmul.f32 %v2015, %v2016
    %v2018 = vsub.f32 1.0, %v2017
    %v2019 = vmul.f32 %v2016, %v2018
    %v2020 = vadd.f32 %v2016, %v2019
    %vm2021 = vweird.f32 %v2015
    %vm2022 = vweird.f32 %v2016
    %vm2023 = vmor %vm2021, %vm2022
    %v2024 = vsel %vm2023, %v2016, %v2020
    %v2025 = vand.u32 2147483647, %v2015
    %vm2026 = vcmp.eq.f32.partialorder %v2025, 8.507059e+37
    %v2027 = vand.u32 %v2015, 2147483648
    %v2028 = vor.u32 1.1754944e-38, %v2027
    %v2029 = vsel %vm2026, %v2028, %v2024
    %v2030 = vmul.f32 1.0, %v2029
    %v2031 = vxor.u32 %v2009, 2147483648
    %v2032 = vmul.f32 %v2031, 1.442695
    %v2033 = vpow.pop %v2032
    %v2034 = vadd.f32 %v2033, 1.0
    %v2035 = vrcp.pop %v2034
    %v2036 = vmul.f32 %v2034, %v2035
    %v2037 = vsub.f32 1.0, %v2036
    %v2038 = vmul.f32 %v2035, %v2037
    %v2039 = vadd.f32 %v2035, %v2038
    %vm2040 = vweird.f32 %v2034
    %vm2041 = vweird.f32 %v2035
    %vm2042 = vmor %vm2040, %vm2041
    %v2043 = vsel %vm2042, %v2035, %v2039
    %v2044 = vand.u32 2147483647, %v2034
    %vm2045 = vcmp.eq.f32.partialorder %v2044, 8.507059e+37
    %v2046 = vand.u32 %v2034, 2147483648
    %v2047 = vor.u32 1.1754944e-38, %v2046
    %v2048 = vsel %vm2045, %v2047, %v2043
    %v2049 = vmul.f32 1.0, %v2048
    %v2050 = vtanh.pop %v2010
    %v2051 = vxor.u32 %v2011, 2147483648
    %v2052 = vmul.f32 %v2051, 1.442695
    %v2053 = vpow.pop %v2052
    %v2054 = vadd.f32 %v2053, 1.0
    %v2055 = vrcp.pop %v2054
    %v2056 = vmul.f32 %v2054, %v2055
    %v2057 = vsub.f32 1.0, %v2056
    %v2058 = vmul.f32 %v2055, %v2057
    %v2059 = vadd.f32 %v2055, %v2058
    %vm2060 = vweird.f32 %v2054
    %vm2061 = vweird.f32 %v2055
    %vm2062 = vmor %vm2060, %vm2061
    %v2063 = vsel %vm2062, %v2055, %v2059
    %v2064 = vand.u32 2147483647, %v2054
    %vm2065 = vcmp.eq.f32.partialorder %v2064, 8.507059e+37
    %v2066 = vand.u32 %v2054, 2147483648
    %v2067 = vor.u32 1.1754944e-38, %v2066
    %v2068 = vsel %vm2065, %v2067, %v2063
    %v2069 = vmul.f32 1.0, %v2068
    %v2070 = vmul.f32 %v2049, %v1859
    %v2071 = vmul.f32 %v2030, %v2050
    %v2072 = vadd.f32 %v2070, %v2071
    %2073 = vst [vmem:[#allocation3] sm:$0xff] %v2072
    %v2074 = vtanh.pop %v2072
    %v2075 = vmul.f32 %v2069, %v2074
    %2076 = vst [vmem:[#allocation2] sm:$0xff] %v2075
    // Predicated region
    $region42: #{tpu_custom_call.1} parent=1 // pred_check
      %p2077 = pneg %p72
    $region43: #{tpu_custom_call.1} parent=1 // pred_check_branch
      %2079 = sbr.rel (%p2077) target = $region45
    $region44: #{tpu_custom_call.1} parent=1 // pred_region
      %v2080 = vld [vmem:[#allocation2] sm:$0xff]
      %v2081 = vld [vmem:[%s4] sm:$0x1]
      %v2083 = vperm.slane %v2081, 0
      %v2085 = vmul.f32 %v2080, %v2083
      %2086 = vadd.xlane.f32.xlu0 %v2085
      %v2087 = vpop.xlane.xlu0 %2086
      %v2088 = vld [vmem:[#allocation5] sm:$0x1]
      %v2090 = vperm.slane %v2088, 0
      %v2092 = vadd.f32 %v2087, %v2090
      %vm2093 = vcmask 7168
      %2094 = vst.msk [vmem:[%s6] sm:$0xff] %vm2093, %v2092
    $region45: #{tpu_custom_call.1} parent=1 // pred_fallthru
      _
    // Predicated region
    $region46: #{tpu_custom_call.1} parent=1 // pred_check
      _
    $region47: #{tpu_custom_call.1} parent=1 // pred_check_branch
      %2096 = sbr.rel (0) target = $region49
    $region48: #{tpu_custom_call.1} parent=1 // pred_region
      _
    $region49: #{tpu_custom_call.1} parent=1 // pred_fallthru
      _
    // Predicated region
    $region50: #{tpu_custom_call.1} parent=1 // pred_check
      _
    $region51: #{tpu_custom_call.1} parent=1 // pred_check_branch
      %2098 = sbr.rel (0) target = $region53
    $region52: #{tpu_custom_call.1} parent=1 // pred_region
      _
    $region53: #{tpu_custom_call.1} parent=1 // pred_fallthru
      _
    %2099 = vsyncpa [#allocation7], 1
    %2100 = vsyncpa [#allocation9], 1

</llo_original>
